<compile_context>
chip_gen: v7x
topology: tpu7x:2x2x1
jax: 0.10.0
libtpu: 0.0.40
codegen_flags: <defaults>
</compile_context>

<pallas_src>
import functools

import jax
import jax.numpy as jnp
from jax.experimental import pallas as pl
from jax.experimental.pallas import tpu as pltpu


def _round_up(v, m):
    return (v + m - 1) // m * m


FUSED_LIMIT_BYTES = (3 * 1024 * 1024) // 2   # fused path if padded image <= 1.5 MiB f32
STRIP_TARGET_BYTES = 1024 * 1024             # ~1 MiB f32 per strip in the 2-pass path
VMEM_LIMIT_BYTES = 32 * 1024 * 1024          # within physical VMEM on v5e/v6e/v7x


# --------------------------------------------------------------------------- #
# Shared separable Sobel stencil on one row strip (values, not refs).
# --------------------------------------------------------------------------- #
def _edge_magnitude(x, up, dn, mask_wrap):
    """Sobel edge magnitude for a row strip.

    x  : (R, Wp)  strip rows (Wp is a multiple of 128)
    up : (1, Wp)  row directly above the strip (zeros at the image top)
    dn : (1, Wp)  row directly below the strip (zeros at the image bottom)
    mask_wrap : static bool; True when the last lane column is a real image
        column (W == Wp), so the lane-roll wraparound must be zeroed.  When
        W < Wp the wrapped column is a zero pad column and no mask is needed.
    """
    r, w_p = x.shape

    # Vertical 3-tap filters first (needs only the two tiny halo rows).
    top = jnp.concatenate([up, x[: r - 1]], axis=0)     # value at row-1
    bot = jnp.concatenate([x[1:], dn], axis=0)          # value at row+1
    vs = top + (x + x) + bot                             # vertical smoothing (Sobel-x)
    vd = bot - top                                       # vertical difference (Sobel-y)

    # Horizontal neighbours via lane rolls (XLU) — no lane-unaligned concat.
    vs_l = pltpu.roll(vs, 1, axis=1)                     # value at col-1
    vs_r = pltpu.roll(vs, w_p - 1, axis=1)               # value at col+1
    vd_l = pltpu.roll(vd, 1, axis=1)
    vd_r = pltpu.roll(vd, w_p - 1, axis=1)

    if mask_wrap:
        lane = jax.lax.broadcasted_iota(jnp.int32, (1, w_p), 1)
        left_ok = lane > 0                               # conv zero pad at col 0
        right_ok = lane < (w_p - 1)                      # conv zero pad at col W-1
        vs_l = jnp.where(left_ok, vs_l, 0.0)
        vd_l = jnp.where(left_ok, vd_l, 0.0)
        vs_r = jnp.where(right_ok, vs_r, 0.0)
        vd_r = jnp.where(right_ok, vd_r, 0.0)

    ex = vs_r - vs_l                                     # Sobel-x response
    ey = vd_l + (vd + vd) + vd_r                         # Sobel-y response
    return jnp.sqrt(ex * ex + ey * ey)


# --------------------------------------------------------------------------- #
# Fused single-pass kernel (whole image resident in VMEM).
# --------------------------------------------------------------------------- #
def _sobel_fused_kernel(x_ref, out_ref, *, low, high, w_valid, mask_wrap):
    x = x_ref[...]                                       # (H, Wp)
    h, w_p = x.shape
    zero_row = jnp.zeros((1, w_p), jnp.float32)
    edge = _edge_magnitude(x, zero_row, zero_row, mask_wrap)

    # Global max over the valid image columns only.
    if w_valid < w_p:
        lane = jax.lax.broadcasted_iota(jnp.int32, (1, w_p), 1)
        edge_m = jnp.where(lane < w_valid, edge, 0.0)
    else:
        edge_m = edge
    inv = 1.0 / jnp.max(edge_m)

    e = edge * inv
    e = jnp.where(e >= high, jnp.float32(1.0), e)        # same order as torch code
    e = jnp.where(e <= low, jnp.float32(0.0), e)
    out_ref[...] = e


# --------------------------------------------------------------------------- #
# Pass 1 (large images): per-strip edge max (no edge map stored).
# --------------------------------------------------------------------------- #
def _sobel_max_kernel(x_ref, up_ref, dn_ref, max_ref, *, w_valid, mask_wrap,
                      rows_last, need_row_mask):
    i = pl.program_id(0)
    x = x_ref[...]                                       # (tH, Wp)
    w_p = x.shape[1]
    edge = _edge_magnitude(x, up_ref[0], dn_ref[0], mask_wrap)

    if w_valid < w_p:                                    # mask wrapper pad columns
        lane = jax.lax.broadcasted_iota(jnp.int32, (1, w_p), 1)
        edge = jnp.where(lane < w_valid, edge, 0.0)

    max_ref[...] = jnp.full(max_ref.shape, jnp.max(edge), jnp.float32)

    if need_row_mask:
        # Only the last strip contains wrapper pad rows; gate the extra work.
        @pl.when(i == pl.num_programs(0) - 1)
        def _():
            row = jax.lax.broadcasted_iota(jnp.int32, (x.shape[0], 1), 0)
            masked = jnp.where(row < rows_last, edge, 0.0)
            max_ref[...] = jnp.full(max_ref.shape, jnp.max(masked), jnp.float32)


# --------------------------------------------------------------------------- #
# Pass 2 (large images): recompute stencil, normalize + double threshold.
# --------------------------------------------------------------------------- #
def _sobel_out_kernel(x_ref, up_ref, dn_ref, inv_ref, out_ref, *, low, high,
                      mask_wrap):
    edge = _edge_magnitude(x_ref[...], up_ref[0], dn_ref[0], mask_wrap)
    e = edge * inv_ref[...]                              # (tH,Wp) * (1,1) broadcast
    e = jnp.where(e >= high, jnp.float32(1.0), e)
    e = jnp.where(e <= low, jnp.float32(0.0), e)
    out_ref[...] = e                                     # pad rows/cols cropped later


# --------------------------------------------------------------------------- #
# Wrapper
# --------------------------------------------------------------------------- #
@functools.partial(jax.jit,
                   static_argnames=("low_threshold", "high_threshold", "strip_rows"))
def sobel_operator(image_nchw, low_threshold, high_threshold, *, strip_rows=None):
    """image_nchw: (1, 1, H, W) float32 in [0, 1]. Returns (1, 1, H, W) float32."""
    n, c, H, W = image_nchw.shape
    assert n == 1 and c == 1, "SobelOperator expects a single grayscale image"
    x = image_nchw[0, 0].astype(jnp.float32)

    low = float(low_threshold)
    high = float(high_threshold)
    Wp = _round_up(W, 128)                # lane-dense width
    mask_wrap = (Wp == W)                 # last lane column is real image data

    # ---- fused single-pass fast path (image fits the VMEM budget) ----------
    if strip_rows is None and H * Wp * 4 <= FUSED_LIMIT_BYTES:
        xw = x if Wp == W else jnp.pad(x, ((0, 0), (0, Wp - W)))
        out = pl.pallas_call(
            functools.partial(_sobel_fused_kernel, low=low, high=high,
                              w_valid=W, mask_wrap=mask_wrap),
            out_shape=jax.ShapeDtypeStruct((H, Wp), jnp.float32),
            compiler_params=pltpu.CompilerParams(
                vmem_limit_bytes=VMEM_LIMIT_BYTES),
        )(xw)
        return out[:, :W][None, None]

    # ---- two-pass strip path (large images) ---------------------------------
    budget_rows = max(8, ((STRIP_TARGET_BYTES // (Wp * 4)) // 8) * 8)
    tH = min(1024, budget_rows, _round_up(H, 8))
    if strip_rows is not None:
        tH = max(8, min(_round_up(int(strip_rows), 8), _round_up(H, 8)))
    Hp = _round_up(H, tH)
    nstrips = Hp // tH

    if (Hp, Wp) != (H, W):
        xw = jnp.pad(x, ((0, Hp - H), (0, Wp - W)))
    else:
        xw = x
    need_row_mask = (Hp != H)
    rows_last = H - (nstrips - 1) * tH    # static valid-row count of the last strip

    # Tiny per-strip vertical halos: the row above / below each strip.
    s = jnp.arange(nstrips)
    up = xw[jnp.maximum(s * tH - 1, 0)][:, None, :]          # (nstrips, 1, Wp)
    dn = xw[jnp.minimum(s * tH + tH, Hp - 1)][:, None, :]    # (nstrips, 1, Wp)
    up = up.at[0].set(0.0)       # conv zero padding above row 0
    dn = dn.at[-1].set(0.0)      # conv zero padding below the last row

    # ---- pass 1: per-strip maxes (strip axis fully parallel) ----------------
    strip_max = pl.pallas_call(
        functools.partial(_sobel_max_kernel, w_valid=W, mask_wrap=mask_wrap,
                          rows_last=rows_last, need_row_mask=need_row_mask),
        grid=(nstrips,),
        in_specs=[
            pl.BlockSpec((tH, Wp), lambda i: (i, 0)),
            pl.BlockSpec((1, 1, Wp), lambda i: (i, 0, 0)),
            pl.BlockSpec((1, 1, Wp), lambda i: (i, 0, 0)),
        ],
        out_specs=pl.BlockSpec((8, 128), lambda i: (i, 0)),
        out_shape=jax.ShapeDtypeStruct((nstrips * 8, 128), jnp.float32),
        compiler_params=pltpu.CompilerParams(
            dimension_semantics=("parallel",),
            vmem_limit_bytes=VMEM_LIMIT_BYTES),
    )(xw, up, dn)

    # Tiny reduction + reciprocal on the host-side XLA graph (one scalar).
    inv = (1.0 / jnp.max(strip_max)).reshape(1, 1).astype(jnp.float32)

    # ---- pass 2: recompute stencil, normalize + threshold -------------------
    out = pl.pallas_call(
        functools.partial(_sobel_out_kernel, low=low, high=high,
                          mask_wrap=mask_wrap),
        grid=(nstrips,),
        in_specs=[
            pl.BlockSpec((tH, Wp), lambda i: (i, 0)),
            pl.BlockSpec((1, 1, Wp), lambda i: (i, 0, 0)),
            pl.BlockSpec((1, 1, Wp), lambda i: (i, 0, 0)),
            pl.BlockSpec((1, 1), lambda i: (0, 0)),
        ],
        out_specs=pl.BlockSpec((tH, Wp), lambda i: (i, 0)),
        out_shape=jax.ShapeDtypeStruct((Hp, Wp), jnp.float32),
        compiler_params=pltpu.CompilerParams(
            dimension_semantics=("parallel",),
            vmem_limit_bytes=VMEM_LIMIT_BYTES),
    )(xw, up, dn, inv)

    return out[:H, :W][None, None]


# --------------------------------------------------------------------------- #
# Pure-JAX reference (mirrors the PyTorch forward) + robust checker.
# --------------------------------------------------------------------------- #
def _reference_edge(image_nchw):
    """Pre-threshold normalized edge map via lax.conv."""
    wx = jnp.array([[-1.0, 0.0, 1.0], [-2.0, 0.0, 2.0], [-1.0, 0.0, 1.0]],
                   jnp.float32).reshape(1, 1, 3, 3)
    wy = jnp.array([[-1.0, -2.0, -1.0], [0.0, 0.0, 0.0], [1.0, 2.0, 1.0]],
                   jnp.float32).reshape(1, 1, 3, 3)
    dnums = jax.lax.conv_dimension_numbers(image_nchw.shape, wx.shape,
                                           ("NCHW", "OIHW", "NCHW"))
    ex = jax.lax.conv_general_dilated(image_nchw, wx, (1, 1), ((1, 1), (1, 1)),
                                      dimension_numbers=dnums,
                                      precision=jax.lax.Precision.HIGHEST)
    ey = jax.lax.conv_general_dilated(image_nchw, wy, (1, 1), ((1, 1), (1, 1)),
                                      dimension_numbers=dnums,
                                      precision=jax.lax.Precision.HIGHEST)
    edge = jnp.sqrt(ex * ex + ey * ey)
    return edge / jnp.max(edge)


def _reference(image_nchw, low, high):
    edge = _reference_edge(image_nchw)
    edge = jnp.where(edge >= high, 1.0, edge)
    edge = jnp.where(edge <= low, 0.0, edge)
    return edge


def _check(out, image_nchw, low, high, tol=1e-4):
    ref = _reference(image_nchw, low, high)
    pre = _reference_edge(image_nchw)
    ok = jnp.abs(out - ref) <= tol
    # Pixels whose normalized edge value lies (within float rounding) exactly on
    # a threshold may legitimately land on either side of the comparison.
    boundary = (jnp.abs(pre - low) <= tol) | (jnp.abs(pre - high) <= tol)
    assert bool(jnp.all(ok | boundary)), "kernel output mismatches reference"


if __name__ == "__main__":
    key = jax.random.PRNGKey(0)
    k1, k2 = jax.random.split(key)
    low_threshold, high_threshold = 0.1, 0.3

    # 1) Lane-aligned image, fused single-pass path (whole image in VMEM).
    image = jax.random.uniform(k1, (1, 1, 128, 256), dtype=jnp.float32)
    out = jax.block_until_ready(sobel_operator(image, low_threshold, high_threshold))
    assert out.shape == image.shape and out.dtype == jnp.float32
    _check(out, image, low_threshold, high_threshold)

    # 2) Same image forced through the two-pass strip path (W == Wp wrap mask).
    out = jax.block_until_ready(
        sobel_operator(image, low_threshold, high_threshold, strip_rows=32))
    _check(out, image, low_threshold, high_threshold)

    # 3) Unaligned image through the strip path (pad/crop + row/col masking).
    image2 = jax.random.uniform(k2, (1, 1, 100, 200), dtype=jnp.float32)
    out2 = jax.block_until_ready(
        sobel_operator(image2, low_threshold, high_threshold, strip_rows=40))
    assert out2.shape == image2.shape
    _check(out2, image2, low_threshold, high_threshold)

    # 4) Unaligned image, fused path (column masking, no row padding).
    out2 = jax.block_until_ready(sobel_operator(image2, low_threshold, high_threshold))
    _check(out2, image2, low_threshold, high_threshold)

    print("KERNEL_OK")
</pallas_src>

<mosaic_0001>
module attributes {stable_mosaic.version = 11 : i64} {
  func.func @_sobel_fused_kernel(%arg0: memref<128x256xf32, #tpu.memory_space<vmem>>, %arg1: memref<128x256xf32, #tpu.memory_space<vmem>>) attributes {dimension_semantics = [], scalar_prefetch = 0 : i64, scratch_operands = 0 : i64, tpu.core_type = #tpu.core_type<tc>} {
    %c0 = arith.constant 0 : index
    %c0_0 = arith.constant 0 : index
    %0 = vector.load %arg0[%c0, %c0_0] : memref<128x256xf32, #tpu.memory_space<vmem>>, vector<128x256xf32>
    %cst = arith.constant 0.000000e+00 : f32
    %1 = vector.broadcast %cst : f32 to vector<1x256xf32>
    %2 = vector.extract_strided_slice %0 {offsets = [0, 0], sizes = [127, 256], strides = [1, 1]} : vector<128x256xf32> to vector<127x256xf32>
    %3 = tpu.concatenate %1, %2 in 0 : vector<1x256xf32>, vector<127x256xf32> -> vector<128x256xf32>
    %4 = vector.extract_strided_slice %0 {offsets = [1, 0], sizes = [127, 256], strides = [1, 1]} : vector<128x256xf32> to vector<127x256xf32>
    %5 = tpu.concatenate %4, %1 in 0 : vector<127x256xf32>, vector<1x256xf32> -> vector<128x256xf32>
    %6 = arith.addf %0, %0 : vector<128x256xf32>
    %7 = arith.addf %3, %6 : vector<128x256xf32>
    %8 = arith.addf %7, %5 : vector<128x256xf32>
    %9 = arith.subf %5, %3 : vector<128x256xf32>
    %c1_i32 = arith.constant 1 : i32
    %10 = tpu.dynamic_rotate %8 by %c1_i32 dim 1 : vector<128x256xf32>, i32 -> vector<128x256xf32>
    %c255_i32 = arith.constant 255 : i32
    %11 = tpu.dynamic_rotate %8 by %c255_i32 dim 1 : vector<128x256xf32>, i32 -> vector<128x256xf32>
    %c1_i32_1 = arith.constant 1 : i32
    %12 = tpu.dynamic_rotate %9 by %c1_i32_1 dim 1 : vector<128x256xf32>, i32 -> vector<128x256xf32>
    %c255_i32_2 = arith.constant 255 : i32
    %13 = tpu.dynamic_rotate %9 by %c255_i32_2 dim 1 : vector<128x256xf32>, i32 -> vector<128x256xf32>
    %14 = tpu.iota {dimensions = array<i32: 1>} : vector<1x256xi32>
    %c0_i32 = arith.constant 0 : i32
    %15 = vector.broadcast %c0_i32 : i32 to vector<1x256xi32>
    %16 = arith.cmpi sgt, %14, %15 : vector<1x256xi32>
    %c255_i32_3 = arith.constant 255 : i32
    %17 = vector.broadcast %c255_i32_3 : i32 to vector<1x256xi32>
    %18 = arith.cmpi slt, %14, %17 : vector<1x256xi32>
    %cst_4 = arith.constant 0.000000e+00 : f32
    %19 = vector.shape_cast %16 : vector<1x256xi1> to vector<1x256xi1>
    %20 = vector.broadcast %19 : vector<1x256xi1> to vector<128x256xi1>
    %21 = vector.broadcast %cst_4 : f32 to vector<128x256xf32>
    %22 = arith.select %20, %10, %21 : vector<128x256xi1>, vector<128x256xf32>
    %cst_5 = arith.constant 0.000000e+00 : f32
    %23 = vector.shape_cast %16 : vector<1x256xi1> to vector<1x256xi1>
    %24 = vector.broadcast %23 : vector<1x256xi1> to vector<128x256xi1>
    %25 = vector.broadcast %cst_5 : f32 to vector<128x256xf32>
    %26 = arith.select %24, %12, %25 : vector<128x256xi1>, vector<128x256xf32>
    %cst_6 = arith.constant 0.000000e+00 : f32
    %27 = vector.shape_cast %18 : vector<1x256xi1> to vector<1x256xi1>
    %28 = vector.broadcast %27 : vector<1x256xi1> to vector<128x256xi1>
    %29 = vector.broadcast %cst_6 : f32 to vector<128x256xf32>
    %30 = arith.select %28, %11, %29 : vector<128x256xi1>, vector<128x256xf32>
    %cst_7 = arith.constant 0.000000e+00 : f32
    %31 = vector.shape_cast %18 : vector<1x256xi1> to vector<1x256xi1>
    %32 = vector.broadcast %31 : vector<1x256xi1> to vector<128x256xi1>
    %33 = vector.broadcast %cst_7 : f32 to vector<128x256xf32>
    %34 = arith.select %32, %13, %33 : vector<128x256xi1>, vector<128x256xf32>
    %35 = arith.subf %30, %22 : vector<128x256xf32>
    %36 = arith.addf %9, %9 : vector<128x256xf32>
    %37 = arith.addf %26, %36 : vector<128x256xf32>
    %38 = arith.addf %37, %34 : vector<128x256xf32>
    %39 = arith.mulf %35, %35 : vector<128x256xf32>
    %40 = arith.mulf %38, %38 : vector<128x256xf32>
    %41 = arith.addf %39, %40 : vector<128x256xf32>
    %42 = math.sqrt %41 : vector<128x256xf32>
    %43 = vector.shape_cast %42 : vector<128x256xf32> to vector<1x128x256xf32>
    %cst_8 = arith.constant dense<0xFF800000> : vector<1xf32>
    %44 = vector.multi_reduction <maximumf>, %43, %cst_8 [1, 2] : vector<1x128x256xf32> to vector<1xf32>
    %45 = vector.shape_cast %44 : vector<1xf32> to vector<1x1x1xf32>
    %46 = vector.extract %45[0, 0, 0] : f32 from vector<1x1x1xf32>
    %cst_9 = arith.constant 1.000000e+00 : f32
    %47 = arith.divf %cst_9, %46 : f32
    %48 = vector.broadcast %47 : f32 to vector<128x256xf32>
    %49 = arith.mulf %42, %48 : vector<128x256xf32>
    %cst_10 = arith.constant 3.000000e-01 : f32
    %50 = vector.broadcast %cst_10 : f32 to vector<128x256xf32>
    %51 = arith.cmpf oge, %49, %50 : vector<128x256xf32>
    %cst_11 = arith.constant 1.000000e+00 : f32
    %52 = vector.broadcast %cst_11 : f32 to vector<128x256xf32>
    %53 = arith.select %51, %52, %49 : vector<128x256xi1>, vector<128x256xf32>
    %cst_12 = arith.constant 1.000000e-01 : f32
    %54 = vector.broadcast %cst_12 : f32 to vector<128x256xf32>
    %55 = arith.cmpf ole, %53, %54 : vector<128x256xf32>
    %cst_13 = arith.constant 0.000000e+00 : f32
    %56 = vector.broadcast %cst_13 : f32 to vector<128x256xf32>
    %57 = arith.select %55, %56, %53 : vector<128x256xi1>, vector<128x256xf32>
    %c0_14 = arith.constant 0 : index
    %c0_15 = arith.constant 0 : index
    %58 = vector.load %arg1[%c0_14, %c0_15] : memref<128x256xf32, #tpu.memory_space<vmem>>, vector<128x256xf32>
    tpu.vector_store %arg1[%c0_14, %c0_15], %57 {strides = array<i32>} : memref<128x256xf32, #tpu.memory_space<vmem>>, vector<128x256xf32>,
    return
  }
}

</mosaic_0001>

<llo_original>
// kernel: sobel_operator.1
$region0: #{sobel_operator.1}
  #allocation0 [shape = 'u32[]', space=smem, size = 0x4, offset = 0x4, fixed_abs, tag = 'smem constant byte address 0x4 - core index']
  #allocation1 [shape = 'u32[144,128]{1,0:T(1,128)}', space=vmem, size = 0x12000, scoped, tag = 'internal scratch']
  %s0 = inlined_call_operand.hbm [shape: f32[128,256], index: 0, kind: input, shape index: {}]
  %s1 = inlined_call_operand.hbm [shape: f32[128,256], index: 1, kind: output, shape index: {}]
  %s2 = sld [smem:[#allocation0]]
  $region18: #{sobel_operator.1} parent=0
    _
  %s4 = ssub.s32 1, %s2
  %s5 = scalar_select 0, %s4, %s2
  $region1: #{sobel_operator.1} parent=0
    #allocation2 [shape = 'u8[131072]{0}', space=vmem, size = 0x20000, scoped, tag = 'input window, operand 0, single buffered']
    #allocation3 [shape = 's32[1]{0}', space=sflag, size = 0x4, scoped, tag = 'scoped memory for sobel_operator.1']
    #allocation4 [shape = 's32[1]{0}', space=sflag, size = 0x4, scoped, tag = 'scoped memory for sobel_operator.1']
    #allocation5 [shape = 'u8[131072]{0}', space=vmem, size = 0x20000, scoped, tag = 'output window, operand 0, single buffered']
    %6 = vsyncpa [#allocation3], 0
    %7 = vsyncpa [#allocation4], 0
    // Predicated region
    $region2: #{sobel_operator.1} parent=1 // pred_check
      _
    $region3: #{sobel_operator.1} parent=1 // pred_check_branch
      %9 = sbr.rel (0) target = $region5
    $region4: #{sobel_operator.1} parent=1 // pred_region
      %s11 = ssub.s32 4096, 4096
      %12 = vsyncadd [#allocation3], %s11
      %s13 = sshll.u32 [#allocation2], 4
      %s14 = int_to_ptr.vmem [resolvable:$true] %s13
      %19 = dma.hbm_to_vmem [thread:$0]  %s0, 4096, %s14, [#allocation3], 256, 256, 16
    $region5: #{sobel_operator.1} parent=1 // pred_fallthru
      _
    // Predicated region
    $region6: #{sobel_operator.1} parent=1 // pred_check
      _
    $region7: #{sobel_operator.1} parent=1 // pred_check_branch
      %21 = sbr.rel (0) target = $region9
    $region8: #{sobel_operator.1} parent=1 // pred_region
      %22 = dma.done [#allocation3], 4096
    $region9: #{sobel_operator.1} parent=1 // pred_fallthru
      _
    %v23 = vld [vmem:[#allocation2] sm:$0xff]
    %v24 = vld [vmem:[#allocation2 + $0x8] sm:$0xff]
    %v25 = vld [vmem:[#allocation2 + $0x10] sm:$0xff]
    %v26 = vld [vmem:[#allocation2 + $0x18] sm:$0xff]
    %v27 = vld [vmem:[#allocation2 + $0x20] sm:$0xff]
    %v28 = vld [vmem:[#allocation2 + $0x28] sm:$0xff]
    %v29 = vld [vmem:[#allocation2 + $0x30] sm:$0xff]
    %v30 = vld [vmem:[#allocation2 + $0x38] sm:$0xff]
    %v31 = vld [vmem:[#allocation2 + $0x40] sm:$0xff]
    %v32 = vld [vmem:[#allocation2 + $0x48] sm:$0xff]
    %v33 = vld [vmem:[#allocation2 + $0x50] sm:$0xff]
    %v34 = vld [vmem:[#allocation2 + $0x58] sm:$0xff]
    %v35 = vld [vmem:[#allocation2 + $0x60] sm:$0xff]
    %v36 = vld [vmem:[#allocation2 + $0x68] sm:$0xff]
    %v37 = vld [vmem:[#allocation2 + $0x70] sm:$0xff]
    %v38 = vld [vmem:[#allocation2 + $0x78] sm:$0xff]
    %v39 = vld [vmem:[#allocation2 + $0x80] sm:$0xff]
    %v40 = vld [vmem:[#allocation2 + $0x88] sm:$0xff]
    %v41 = vld [vmem:[#allocation2 + $0x90] sm:$0xff]
    %v42 = vld [vmem:[#allocation2 + $0x98] sm:$0xff]
    %v43 = vld [vmem:[#allocation2 + $0xa0] sm:$0xff]
    %v44 = vld [vmem:[#allocation2 + $0xa8] sm:$0xff]
    %v45 = vld [vmem:[#allocation2 + $0xb0] sm:$0xff]
    %v46 = vld [vmem:[#allocation2 + $0xb8] sm:$0xff]
    %v47 = vld [vmem:[#allocation2 + $0xc0] sm:$0xff]
    %v48 = vld [vmem:[#allocation2 + $0xc8] sm:$0xff]
    %v49 = vld [vmem:[#allocation2 + $0xd0] sm:$0xff]
    %v50 = vld [vmem:[#allocation2 + $0xd8] sm:$0xff]
    %v51 = vld [vmem:[#allocation2 + $0xe0] sm:$0xff]
    %v52 = vld [vmem:[#allocation2 + $0xe8] sm:$0xff]
    %v53 = vld [vmem:[#allocation2 + $0xf0] sm:$0xff]
    %v54 = vld [vmem:[#allocation2 + $0xf8] sm:$0xff]
    %vm87 = vcmask 1040384
    %v88 = vrot.slane %v23, 7
    %v89 = vrot.slane %v24, 7
    %v90 = vrot.slane %v25, 7
    %v91 = vsel %vm87, %v88, %v90
    %v92 = vrot.slane %v26, 7
    %v93 = vsel %vm87, %v89, %v92
    %v94 = vrot.slane %v27, 7
    %v95 = vsel %vm87, %v90, %v94
    %v96 = vrot.slane %v28, 7
    %v97 = vsel %vm87, %v92, %v96
    %v98 = vrot.slane %v29, 7
    %v99 = vsel %vm87, %v94, %v98
    %v100 = vrot.slane %v30, 7
    %v101 = vsel %vm87, %v96, %v100
    %v102 = vrot.slane %v31, 7
    %v103 = vsel %vm87, %v98, %v102
    %v104 = vrot.slane %v32, 7
    %v105 = vsel %vm87, %v100, %v104
    %v106 = vrot.slane %v33, 7
    %v107 = vsel %vm87, %v102, %v106
    %v108 = vrot.slane %v34, 7
    %v109 = vsel %vm87, %v104, %v108
    %v110 = vrot.slane %v35, 7
    %v111 = vsel %vm87, %v106, %v110
    %v112 = vrot.slane %v36, 7
    %v113 = vsel %vm87, %v108, %v112
    %v114 = vrot.slane %v37, 7
    %v115 = vsel %vm87, %v110, %v114
    %v116 = vrot.slane %v38, 7
    %v117 = vsel %vm87, %v112, %v116
    %v118 = vrot.slane %v39, 7
    %v119 = vsel %vm87, %v114, %v118
    %v120 = vrot.slane %v40, 7
    %v121 = vsel %vm87, %v116, %v120
    %v122 = vrot.slane %v41, 7
    %v123 = vsel %vm87, %v118, %v122
    %v124 = vrot.slane %v42, 7
    %v125 = vsel %vm87, %v120, %v124
    %v126 = vrot.slane %v43, 7
    %v127 = vsel %vm87, %v122, %v126
    %v128 = vrot.slane %v44, 7
    %v129 = vsel %vm87, %v124, %v128
    %v130 = vrot.slane %v45, 7
    %v131 = vsel %vm87, %v126, %v130
    %v132 = vrot.slane %v46, 7
    %v133 = vsel %vm87, %v128, %v132
    %v134 = vrot.slane %v47, 7
    %v135 = vsel %vm87, %v130, %v134
    %v136 = vrot.slane %v48, 7
    %v137 = vsel %vm87, %v132, %v136
    %v138 = vrot.slane %v49, 7
    %v139 = vsel %vm87, %v134, %v138
    %v140 = vrot.slane %v50, 7
    %v141 = vsel %vm87, %v136, %v140
    %v142 = vrot.slane %v51, 7
    %v143 = vsel %vm87, %v138, %v142
    %v144 = vrot.slane %v52, 7
    %v145 = vsel %vm87, %v140, %v144
    %v146 = vrot.slane %v53, 7
    %v147 = vsel %vm87, %v142, %v146
    %v148 = vrot.slane %v54, 7
    %v149 = vsel %vm87, %v144, %v148
    %v182 = vsel %vm87, 0.0, %v88
    %v183 = vsel %vm87, 0.0, %v89
    %vm184 = vcmask 1046528
    %v185 = vrot.slane %v23, 1
    %v186 = vrot.slane %v25, 1
    %v187 = vsel %vm184, %v185, %v186
    %v188 = vrot.slane %v24, 1
    %v189 = vrot.slane %v26, 1
    %v190 = vsel %vm184, %v188, %v189
    %v191 = vrot.slane %v27, 1
    %v192 = vsel %vm184, %v186, %v191
    %v193 = vrot.slane %v28, 1
    %v194 = vsel %vm184, %v189, %v193
    %v195 = vrot.slane %v29, 1
    %v196 = vsel %vm184, %v191, %v195
    %v197 = vrot.slane %v30, 1
    %v198 = vsel %vm184, %v193, %v197
    %v199 = vrot.slane %v31, 1
    %v200 = vsel %vm184, %v195, %v199
    %v201 = vrot.slane %v32, 1
    %v202 = vsel %vm184, %v197, %v201
    %v203 = vrot.slane %v33, 1
    %v204 = vsel %vm184, %v199, %v203
    %v205 = vrot.slane %v34, 1
    %v206 = vsel %vm184, %v201, %v205
    %v207 = vrot.slane %v35, 1
    %v208 = vsel %vm184, %v203, %v207
    %v209 = vrot.slane %v36, 1
    %v210 = vsel %vm184, %v205, %v209
    %v211 = vrot.slane %v37, 1
    %v212 = vsel %vm184, %v207, %v211
    %v213 = vrot.slane %v38, 1
    %v214 = vsel %vm184, %v209, %v213
    %v215 = vrot.slane %v39, 1
    %v216 = vsel %vm184, %v211, %v215
    %v217 = vrot.slane %v40, 1
    %v218 = vsel %vm184, %v213, %v217
    %v219 = vrot.slane %v41, 1
    %v220 = vsel %vm184, %v215, %v219
    %v221 = vrot.slane %v42, 1
    %v222 = vsel %vm184, %v217, %v221
    %v223 = vrot.slane %v43, 1
    %v224 = vsel %vm184, %v219, %v223
    %v225 = vrot.slane %v44, 1
    %v226 = vsel %vm184, %v221, %v225
    %v227 = vrot.slane %v45, 1
    %v228 = vsel %vm184, %v223, %v227
    %v229 = vrot.slane %v46, 1
    %v230 = vsel %vm184, %v225, %v229
    %v231 = vrot.slane %v47, 1
    %v232 = vsel %vm184, %v227, %v231
    %v233 = vrot.slane %v48, 1
    %v234 = vsel %vm184, %v229, %v233
    %v235 = vrot.slane %v49, 1
    %v236 = vsel %vm184, %v231, %v235
    %v237 = vrot.slane %v50, 1
    %v238 = vsel %vm184, %v233, %v237
    %v239 = vrot.slane %v51, 1
    %v240 = vsel %vm184, %v235, %v239
    %v241 = vrot.slane %v52, 1
    %v242 = vsel %vm184, %v237, %v241
    %v243 = vrot.slane %v53, 1
    %v244 = vsel %vm184, %v239, %v243
    %v245 = vrot.slane %v54, 1
    %v246 = vsel %vm184, %v241, %v245
    %v279 = vsel %vm184, %v243, 0.0
    %v280 = vsel %vm184, %v245, 0.0
    %v281 = vadd.f32 %v23, %v23
    %v282 = vadd.f32 %v24, %v24
    %v283 = vadd.f32 %v25, %v25
    %v284 = vadd.f32 %v26, %v26
    %v285 = vadd.f32 %v27, %v27
    %v286 = vadd.f32 %v28, %v28
    %v287 = vadd.f32 %v29, %v29
    %v288 = vadd.f32 %v30, %v30
    %v289 = vadd.f32 %v31, %v31
    %v290 = vadd.f32 %v32, %v32
    %v291 = vadd.f32 %v33, %v33
    %v292 = vadd.f32 %v34, %v34
    %v293 = vadd.f32 %v35, %v35
    %v294 = vadd.f32 %v36, %v36
    %v295 = vadd.f32 %v37, %v37
    %v296 = vadd.f32 %v38, %v38
    %v297 = vadd.f32 %v39, %v39
    %v298 = vadd.f32 %v40, %v40
    %v299 = vadd.f32 %v41, %v41
    %v300 = vadd.f32 %v42, %v42
    %v301 = vadd.f32 %v43, %v43
    %v302 = vadd.f32 %v44, %v44
    %v303 = vadd.f32 %v45, %v45
    %v304 = vadd.f32 %v46, %v46
    %v305 = vadd.f32 %v47, %v47
    %v306 = vadd.f32 %v48, %v48
    %v307 = vadd.f32 %v49, %v49
    %v308 = vadd.f32 %v50, %v50
    %v309 = vadd.f32 %v51, %v51
    %v310 = vadd.f32 %v52, %v52
    %v311 = vadd.f32 %v53, %v53
    %v312 = vadd.f32 %v54, %v54
    %v313 = vadd.f32 %v182, %v281
    %v314 = vadd.f32 %v183, %v282
    %v315 = vadd.f32 %v91, %v283
    %v316 = vadd.f32 %v93, %v284
    %v317 = vadd.f32 %v95, %v285
    %v318 = vadd.f32 %v97, %v286
    %v319 = vadd.f32 %v99, %v287
    %v320 = vadd.f32 %v101, %v288
    %v321 = vadd.f32 %v103, %v289
    %v322 = vadd.f32 %v105, %v290
    %v323 = vadd.f32 %v107, %v291
    %v324 = vadd.f32 %v109, %v292
    %v325 = vadd.f32 %v111, %v293
    %v326 = vadd.f32 %v113, %v294
    %v327 = vadd.f32 %v115, %v295
    %v328 = vadd.f32 %v117, %v296
    %v329 = vadd.f32 %v119, %v297
    %v330 = vadd.f32 %v121, %v298
    %v331 = vadd.f32 %v123, %v299
    %v332 = vadd.f32 %v125, %v300
    %v333 = vadd.f32 %v127, %v301
    %v334 = vadd.f32 %v129, %v302
    %v335 = vadd.f32 %v131, %v303
    %v336 = vadd.f32 %v133, %v304
    %v337 = vadd.f32 %v135, %v305
    %v338 = vadd.f32 %v137, %v306
    %v339 = vadd.f32 %v139, %v307
    %v340 = vadd.f32 %v141, %v308
    %v341 = vadd.f32 %v143, %v309
    %v342 = vadd.f32 %v145, %v310
    %v343 = vadd.f32 %v147, %v311
    %v344 = vadd.f32 %v149, %v312
    %v345 = vadd.f32 %v313, %v187
    %v346 = vadd.f32 %v314, %v190
    %v347 = vadd.f32 %v315, %v192
    %v348 = vadd.f32 %v316, %v194
    %v349 = vadd.f32 %v317, %v196
    %v350 = vadd.f32 %v318, %v198
    %v351 = vadd.f32 %v319, %v200
    %v352 = vadd.f32 %v320, %v202
    %v353 = vadd.f32 %v321, %v204
    %v354 = vadd.f32 %v322, %v206
    %v355 = vadd.f32 %v323, %v208
    %v356 = vadd.f32 %v324, %v210
    %v357 = vadd.f32 %v325, %v212
    %v358 = vadd.f32 %v326, %v214
    %v359 = vadd.f32 %v327, %v216
    %v360 = vadd.f32 %v328, %v218
    %v361 = vadd.f32 %v329, %v220
    %v362 = vadd.f32 %v330, %v222
    %v363 = vadd.f32 %v331, %v224
    %v364 = vadd.f32 %v332, %v226
    %v365 = vadd.f32 %v333, %v228
    %v366 = vadd.f32 %v334, %v230
    %v367 = vadd.f32 %v335, %v232
    %v368 = vadd.f32 %v336, %v234
    %v369 = vadd.f32 %v337, %v236
    %v370 = vadd.f32 %v338, %v238
    %v371 = vadd.f32 %v339, %v240
    %v372 = vadd.f32 %v340, %v242
    %v373 = vadd.f32 %v341, %v244
    %v374 = vadd.f32 %v342, %v246
    %v375 = vadd.f32 %v343, %v279
    %v376 = vadd.f32 %v344, %v280
    %v377 = vsub.f32 %v187, %v182
    %v378 = vsub.f32 %v190, %v183
    %v379 = vsub.f32 %v192, %v91
    %v380 = vsub.f32 %v194, %v93
    %v381 = vsub.f32 %v196, %v95
    %v382 = vsub.f32 %v198, %v97
    %v383 = vsub.f32 %v200, %v99
    %v384 = vsub.f32 %v202, %v101
    %v385 = vsub.f32 %v204, %v103
    %v386 = vsub.f32 %v206, %v105
    %v387 = vsub.f32 %v208, %v107
    %v388 = vsub.f32 %v210, %v109
    %v389 = vsub.f32 %v212, %v111
    %v390 = vsub.f32 %v214, %v113
    %v391 = vsub.f32 %v216, %v115
    %v392 = vsub.f32 %v218, %v117
    %v393 = vsub.f32 %v220, %v119
    %v394 = vsub.f32 %v222, %v121
    %v395 = vsub.f32 %v224, %v123
    %v396 = vsub.f32 %v226, %v125
    %v397 = vsub.f32 %v228, %v127
    %v398 = vsub.f32 %v230, %v129
    %v399 = vsub.f32 %v232, %v131
    %v400 = vsub.f32 %v234, %v133
    %v401 = vsub.f32 %v236, %v135
    %v402 = vsub.f32 %v238, %v137
    %v403 = vsub.f32 %v240, %v139
    %v404 = vsub.f32 %v242, %v141
    %v405 = vsub.f32 %v244, %v143
    %v406 = vsub.f32 %v246, %v145
    %v407 = vsub.f32 %v279, %v147
    %v408 = vsub.f32 %v280, %v149
    %409 = vrot.lane.b32.xlu0 %v345, 1
    %v410 = vpop.permute.xlu0 %409
    %411 = vrot.lane.b32.xlu0 %v347, 1
    %v412 = vpop.permute.xlu0 %411
    %413 = vrot.lane.b32.xlu0 %v349, 1
    %v414 = vpop.permute.xlu0 %413
    %415 = vrot.lane.b32.xlu0 %v351, 1
    %v416 = vpop.permute.xlu0 %415
    %417 = vrot.lane.b32.xlu0 %v353, 1
    %v418 = vpop.permute.xlu0 %417
    %419 = vrot.lane.b32.xlu0 %v355, 1
    %v420 = vpop.permute.xlu0 %419
    %421 = vrot.lane.b32.xlu0 %v357, 1
    %v422 = vpop.permute.xlu0 %421
    %423 = vrot.lane.b32.xlu0 %v359, 1
    %v424 = vpop.permute.xlu0 %423
    %425 = vrot.lane.b32.xlu0 %v361, 1
    %v426 = vpop.permute.xlu0 %425
    %427 = vrot.lane.b32.xlu0 %v363, 1
    %v428 = vpop.permute.xlu0 %427
    %429 = vrot.lane.b32.xlu0 %v365, 1
    %v430 = vpop.permute.xlu0 %429
    %431 = vrot.lane.b32.xlu0 %v367, 1
    %v432 = vpop.permute.xlu0 %431
    %433 = vrot.lane.b32.xlu0 %v369, 1
    %v434 = vpop.permute.xlu0 %433
    %435 = vrot.lane.b32.xlu0 %v371, 1
    %v436 = vpop.permute.xlu0 %435
    %437 = vrot.lane.b32.xlu0 %v373, 1
    %v438 = vpop.permute.xlu0 %437
    %439 = vrot.lane.b32.xlu0 %v375, 1
    %v440 = vpop.permute.xlu0 %439
    %441 = vrot.lane.b32.xlu0 %v346, 1
    %v442 = vpop.permute.xlu0 %441
    %443 = vrot.lane.b32.xlu0 %v348, 1
    %v444 = vpop.permute.xlu0 %443
    %445 = vrot.lane.b32.xlu0 %v350, 1
    %v446 = vpop.permute.xlu0 %445
    %447 = vrot.lane.b32.xlu0 %v352, 1
    %v448 = vpop.permute.xlu0 %447
    %449 = vrot.lane.b32.xlu0 %v354, 1
    %v450 = vpop.permute.xlu0 %449
    %451 = vrot.lane.b32.xlu0 %v356, 1
    %v452 = vpop.permute.xlu0 %451
    %453 = vrot.lane.b32.xlu0 %v358, 1
    %v454 = vpop.permute.xlu0 %453
    %455 = vrot.lane.b32.xlu0 %v360, 1
    %v456 = vpop.permute.xlu0 %455
    %457 = vrot.lane.b32.xlu0 %v362, 1
    %v458 = vpop.permute.xlu0 %457
    %459 = vrot.lane.b32.xlu0 %v364, 1
    %v460 = vpop.permute.xlu0 %459
    %461 = vrot.lane.b32.xlu0 %v366, 1
    %v462 = vpop.permute.xlu0 %461
    %463 = vrot.lane.b32.xlu0 %v368, 1
    %v464 = vpop.permute.xlu0 %463
    %465 = vrot.lane.b32.xlu0 %v370, 1
    %v466 = vpop.permute.xlu0 %465
    %467 = vrot.lane.b32.xlu0 %v372, 1
    %v468 = vpop.permute.xlu0 %467
    %469 = vrot.lane.b32.xlu0 %v374, 1
    %v470 = vpop.permute.xlu0 %469
    %471 = vrot.lane.b32.xlu0 %v376, 1
    %v472 = vpop.permute.xlu0 %471
    %v473 = vlaneseq
    %v474 = vand.u32 %v473, 127
    %vm475 = vcmp.lt.s32.totalorder %v474, 1
    %v476 = vsel %vm475, %v410, %v442
    %v477 = vsel %vm475, %v412, %v444
    %v478 = vsel %vm475, %v414, %v446
    %v479 = vsel %vm475, %v416, %v448
    %v480 = vsel %vm475, %v418, %v450
    %v481 = vsel %vm475, %v420, %v452
    %v482 = vsel %vm475, %v422, %v454
    %v483 = vsel %vm475, %v424, %v456
    %v484 = vsel %vm475, %v426, %v458
    %v485 = vsel %vm475, %v428, %v460
    %v486 = vsel %vm475, %v430, %v462
    %v487 = vsel %vm475, %v432, %v464
    %v488 = vsel %vm475, %v434, %v466
    %v489 = vsel %vm475, %v436, %v468
    %v490 = vsel %vm475, %v438, %v470
    %v491 = vsel %vm475, %v440, %v472
    %v492 = vsel %vm475, %v442, %v410
    %v493 = vsel %vm475, %v444, %v412
    %v494 = vsel %vm475, %v446, %v414
    %v495 = vsel %vm475, %v448, %v416
    %v496 = vsel %vm475, %v450, %v418
    %v497 = vsel %vm475, %v452, %v420
    %v498 = vsel %vm475, %v454, %v422
    %v499 = vsel %vm475, %v456, %v424
    %v500 = vsel %vm475, %v458, %v426
    %v501 = vsel %vm475, %v460, %v428
    %v502 = vsel %vm475, %v462, %v430
    %v503 = vsel %vm475, %v464, %v432
    %v504 = vsel %vm475, %v466, %v434
    %v505 = vsel %vm475, %v468, %v436
    %v506 = vsel %vm475, %v470, %v438
    %v507 = vsel %vm475, %v472, %v440
    %508 = vrot.lane.b32.xlu0 %v345, 127
    %v509 = vpop.permute.xlu0 %508
    %510 = vrot.lane.b32.xlu0 %v347, 127
    %v511 = vpop.permute.xlu0 %510
    %512 = vrot.lane.b32.xlu0 %v349, 127
    %v513 = vpop.permute.xlu0 %512
    %514 = vrot.lane.b32.xlu0 %v351, 127
    %v515 = vpop.permute.xlu0 %514
    %516 = vrot.lane.b32.xlu0 %v353, 127
    %v517 = vpop.permute.xlu0 %516
    %518 = vrot.lane.b32.xlu0 %v355, 127
    %v519 = vpop.permute.xlu0 %518
    %520 = vrot.lane.b32.xlu0 %v357, 127
    %v521 = vpop.permute.xlu0 %520
    %522 = vrot.lane.b32.xlu0 %v359, 127
    %v523 = vpop.permute.xlu0 %522
    %524 = vrot.lane.b32.xlu0 %v361, 127
    %v525 = vpop.permute.xlu0 %524
    %526 = vrot.lane.b32.xlu0 %v363, 127
    %v527 = vpop.permute.xlu0 %526
    %528 = vrot.lane.b32.xlu0 %v365, 127
    %v529 = vpop.permute.xlu0 %528
    %530 = vrot.lane.b32.xlu0 %v367, 127
    %v531 = vpop.permute.xlu0 %530
    %532 = vrot.lane.b32.xlu0 %v369, 127
    %v533 = vpop.permute.xlu0 %532
    %534 = vrot.lane.b32.xlu0 %v371, 127
    %v535 = vpop.permute.xlu0 %534
    %536 = vrot.lane.b32.xlu0 %v373, 127
    %v537 = vpop.permute.xlu0 %536
    %538 = vrot.lane.b32.xlu0 %v375, 127
    %v539 = vpop.permute.xlu0 %538
    %540 = vrot.lane.b32.xlu0 %v346, 127
    %v541 = vpop.permute.xlu0 %540
    %542 = vrot.lane.b32.xlu0 %v348, 127
    %v543 = vpop.permute.xlu0 %542
    %544 = vrot.lane.b32.xlu0 %v350, 127
    %v545 = vpop.permute.xlu0 %544
    %546 = vrot.lane.b32.xlu0 %v352, 127
    %v547 = vpop.permute.xlu0 %546
    %548 = vrot.lane.b32.xlu0 %v354, 127
    %v549 = vpop.permute.xlu0 %548
    %550 = vrot.lane.b32.xlu0 %v356, 127
    %v551 = vpop.permute.xlu0 %550
    %552 = vrot.lane.b32.xlu0 %v358, 127
    %v553 = vpop.permute.xlu0 %552
    %554 = vrot.lane.b32.xlu0 %v360, 127
    %v555 = vpop.permute.xlu0 %554
    %556 = vrot.lane.b32.xlu0 %v362, 127
    %v557 = vpop.permute.xlu0 %556
    %558 = vrot.lane.b32.xlu0 %v364, 127
    %v559 = vpop.permute.xlu0 %558
    %560 = vrot.lane.b32.xlu0 %v366, 127
    %v561 = vpop.permute.xlu0 %560
    %562 = vrot.lane.b32.xlu0 %v368, 127
    %v563 = vpop.permute.xlu0 %562
    %564 = vrot.lane.b32.xlu0 %v370, 127
    %v565 = vpop.permute.xlu0 %564
    %566 = vrot.lane.b32.xlu0 %v372, 127
    %v567 = vpop.permute.xlu0 %566
    %568 = vrot.lane.b32.xlu0 %v374, 127
    %v569 = vpop.permute.xlu0 %568
    %570 = vrot.lane.b32.xlu0 %v376, 127
    %v571 = vpop.permute.xlu0 %570
    %vm572 = vcmp.lt.s32.totalorder %v474, 127
    %v573 = vsel %vm572, %v509, %v541
    %v574 = vsel %vm572, %v511, %v543
    %v575 = vsel %vm572, %v513, %v545
    %v576 = vsel %vm572, %v515, %v547
    %v577 = vsel %vm572, %v517, %v549
    %v578 = vsel %vm572, %v519, %v551
    %v579 = vsel %vm572, %v521, %v553
    %v580 = vsel %vm572, %v523, %v555
    %v581 = vsel %vm572, %v525, %v557
    %v582 = vsel %vm572, %v527, %v559
    %v583 = vsel %vm572, %v529, %v561
    %v584 = vsel %vm572, %v531, %v563
    %v585 = vsel %vm572, %v533, %v565
    %v586 = vsel %vm572, %v535, %v567
    %v587 = vsel %vm572, %v537, %v569
    %v588 = vsel %vm572, %v539, %v571
    %v589 = vsel %vm572, %v541, %v509
    %v590 = vsel %vm572, %v543, %v511
    %v591 = vsel %vm572, %v545, %v513
    %v592 = vsel %vm572, %v547, %v515
    %v593 = vsel %vm572, %v549, %v517
    %v594 = vsel %vm572, %v551, %v519
    %v595 = vsel %vm572, %v553, %v521
    %v596 = vsel %vm572, %v555, %v523
    %v597 = vsel %vm572, %v557, %v525
    %v598 = vsel %vm572, %v559, %v527
    %v599 = vsel %vm572, %v561, %v529
    %v600 = vsel %vm572, %v563, %v531
    %v601 = vsel %vm572, %v565, %v533
    %v602 = vsel %vm572, %v567, %v535
    %v603 = vsel %vm572, %v569, %v537
    %v604 = vsel %vm572, %v571, %v539
    %605 = vrot.lane.b32.xlu0 %v377, 1
    %v606 = vpop.permute.xlu0 %605
    %607 = vrot.lane.b32.xlu0 %v379, 1
    %v608 = vpop.permute.xlu0 %607
    %609 = vrot.lane.b32.xlu0 %v381, 1
    %v610 = vpop.permute.xlu0 %609
    %611 = vrot.lane.b32.xlu0 %v383, 1
    %v612 = vpop.permute.xlu0 %611
    %613 = vrot.lane.b32.xlu0 %v385, 1
    %v614 = vpop.permute.xlu0 %613
    %615 = vrot.lane.b32.xlu0 %v387, 1
    %v616 = vpop.permute.xlu0 %615
    %617 = vrot.lane.b32.xlu0 %v389, 1
    %v618 = vpop.permute.xlu0 %617
    %619 = vrot.lane.b32.xlu0 %v391, 1
    %v620 = vpop.permute.xlu0 %619
    %621 = vrot.lane.b32.xlu0 %v393, 1
    %v622 = vpop.permute.xlu0 %621
    %623 = vrot.lane.b32.xlu0 %v395, 1
    %v624 = vpop.permute.xlu0 %623
    %625 = vrot.lane.b32.xlu0 %v397, 1
    %v626 = vpop.permute.xlu0 %625
    %627 = vrot.lane.b32.xlu0 %v399, 1
    %v628 = vpop.permute.xlu0 %627
    %629 = vrot.lane.b32.xlu0 %v401, 1
    %v630 = vpop.permute.xlu0 %629
    %631 = vrot.lane.b32.xlu0 %v403, 1
    %v632 = vpop.permute.xlu0 %631
    %633 = vrot.lane.b32.xlu0 %v405, 1
    %v634 = vpop.permute.xlu0 %633
    %635 = vrot.lane.b32.xlu0 %v407, 1
    %v636 = vpop.permute.xlu0 %635
    %637 = vrot.lane.b32.xlu0 %v378, 1
    %v638 = vpop.permute.xlu0 %637
    %639 = vrot.lane.b32.xlu0 %v380, 1
    %v640 = vpop.permute.xlu0 %639
    %641 = vrot.lane.b32.xlu0 %v382, 1
    %v642 = vpop.permute.xlu0 %641
    %643 = vrot.lane.b32.xlu0 %v384, 1
    %v644 = vpop.permute.xlu0 %643
    %645 = vrot.lane.b32.xlu0 %v386, 1
    %v646 = vpop.permute.xlu0 %645
    %647 = vrot.lane.b32.xlu0 %v388, 1
    %v648 = vpop.permute.xlu0 %647
    %649 = vrot.lane.b32.xlu0 %v390, 1
    %v650 = vpop.permute.xlu0 %649
    %651 = vrot.lane.b32.xlu0 %v392, 1
    %v652 = vpop.permute.xlu0 %651
    %653 = vrot.lane.b32.xlu0 %v394, 1
    %v654 = vpop.permute.xlu0 %653
    %655 = vrot.lane.b32.xlu0 %v396, 1
    %v656 = vpop.permute.xlu0 %655
    %657 = vrot.lane.b32.xlu0 %v398, 1
    %v658 = vpop.permute.xlu0 %657
    %659 = vrot.lane.b32.xlu0 %v400, 1
    %v660 = vpop.permute.xlu0 %659
    %661 = vrot.lane.b32.xlu0 %v402, 1
    %v662 = vpop.permute.xlu0 %661
    %663 = vrot.lane.b32.xlu0 %v404, 1
    %v664 = vpop.permute.xlu0 %663
    %665 = vrot.lane.b32.xlu0 %v406, 1
    %v666 = vpop.permute.xlu0 %665
    %667 = vrot.lane.b32.xlu0 %v408, 1
    %v668 = vpop.permute.xlu0 %667
    %v669 = vsel %vm475, %v606, %v638
    %v670 = vsel %vm475, %v608, %v640
    %v671 = vsel %vm475, %v610, %v642
    %v672 = vsel %vm475, %v612, %v644
    %v673 = vsel %vm475, %v614, %v646
    %v674 = vsel %vm475, %v616, %v648
    %v675 = vsel %vm475, %v618, %v650
    %v676 = vsel %vm475, %v620, %v652
    %v677 = vsel %vm475, %v622, %v654
    %v678 = vsel %vm475, %v624, %v656
    %v679 = vsel %vm475, %v626, %v658
    %v680 = vsel %vm475, %v628, %v660
    %v681 = vsel %vm475, %v630, %v662
    %v682 = vsel %vm475, %v632, %v664
    %v683 = vsel %vm475, %v634, %v666
    %v684 = vsel %vm475, %v636, %v668
    %v685 = vsel %vm475, %v638, %v606
    %v686 = vsel %vm475, %v640, %v608
    %v687 = vsel %vm475, %v642, %v610
    %v688 = vsel %vm475, %v644, %v612
    %v689 = vsel %vm475, %v646, %v614
    %v690 = vsel %vm475, %v648, %v616
    %v691 = vsel %vm475, %v650, %v618
    %v692 = vsel %vm475, %v652, %v620
    %v693 = vsel %vm475, %v654, %v622
    %v694 = vsel %vm475, %v656, %v624
    %v695 = vsel %vm475, %v658, %v626
    %v696 = vsel %vm475, %v660, %v628
    %v697 = vsel %vm475, %v662, %v630
    %v698 = vsel %vm475, %v664, %v632
    %v699 = vsel %vm475, %v666, %v634
    %v700 = vsel %vm475, %v668, %v636
    %701 = vrot.lane.b32.xlu0 %v377, 127
    %v702 = vpop.permute.xlu0 %701
    %703 = vrot.lane.b32.xlu0 %v379, 127
    %v704 = vpop.permute.xlu0 %703
    %705 = vrot.lane.b32.xlu0 %v381, 127
    %v706 = vpop.permute.xlu0 %705
    %707 = vrot.lane.b32.xlu0 %v383, 127
    %v708 = vpop.permute.xlu0 %707
    %709 = vrot.lane.b32.xlu0 %v385, 127
    %v710 = vpop.permute.xlu0 %709
    %711 = vrot.lane.b32.xlu0 %v387, 127
    %v712 = vpop.permute.xlu0 %711
    %713 = vrot.lane.b32.xlu0 %v389, 127
    %v714 = vpop.permute.xlu0 %713
    %715 = vrot.lane.b32.xlu0 %v391, 127
    %v716 = vpop.permute.xlu0 %715
    %717 = vrot.lane.b32.xlu0 %v393, 127
    %v718 = vpop.permute.xlu0 %717
    %719 = vrot.lane.b32.xlu0 %v395, 127
    %v720 = vpop.permute.xlu0 %719
    %721 = vrot.lane.b32.xlu0 %v397, 127
    %v722 = vpop.permute.xlu0 %721
    %723 = vrot.lane.b32.xlu0 %v399, 127
    %v724 = vpop.permute.xlu0 %723
    %725 = vrot.lane.b32.xlu0 %v401, 127
    %v726 = vpop.permute.xlu0 %725
    %727 = vrot.lane.b32.xlu0 %v403, 127
    %v728 = vpop.permute.xlu0 %727
    %729 = vrot.lane.b32.xlu0 %v405, 127
    %v730 = vpop.permute.xlu0 %729
    %731 = vrot.lane.b32.xlu0 %v407, 127
    %v732 = vpop.permute.xlu0 %731
    %733 = vrot.lane.b32.xlu0 %v378, 127
    %v734 = vpop.permute.xlu0 %733
    %735 = vrot.lane.b32.xlu0 %v380, 127
    %v736 = vpop.permute.xlu0 %735
    %737 = vrot.lane.b32.xlu0 %v382, 127
    %v738 = vpop.permute.xlu0 %737
    %739 = vrot.lane.b32.xlu0 %v384, 127
    %v740 = vpop.permute.xlu0 %739
    %741 = vrot.lane.b32.xlu0 %v386, 127
    %v742 = vpop.permute.xlu0 %741
    %743 = vrot.lane.b32.xlu0 %v388, 127
    %v744 = vpop.permute.xlu0 %743
    %745 = vrot.lane.b32.xlu0 %v390, 127
    %v746 = vpop.permute.xlu0 %745
    %747 = vrot.lane.b32.xlu0 %v392, 127
    %v748 = vpop.permute.xlu0 %747
    %749 = vrot.lane.b32.xlu0 %v394, 127
    %v750 = vpop.permute.xlu0 %749
    %751 = vrot.lane.b32.xlu0 %v396, 127
    %v752 = vpop.permute.xlu0 %751
    %753 = vrot.lane.b32.xlu0 %v398, 127
    %v754 = vpop.permute.xlu0 %753
    %755 = vrot.lane.b32.xlu0 %v400, 127
    %v756 = vpop.permute.xlu0 %755
    %757 = vrot.lane.b32.xlu0 %v402, 127
    %v758 = vpop.permute.xlu0 %757
    %759 = vrot.lane.b32.xlu0 %v404, 127
    %v760 = vpop.permute.xlu0 %759
    %761 = vrot.lane.b32.xlu0 %v406, 127
    %v762 = vpop.permute.xlu0 %761
    %763 = vrot.lane.b32.xlu0 %v408, 127
    %v764 = vpop.permute.xlu0 %763
    %v765 = vsel %vm572, %v702, %v734
    %v766 = vsel %vm572, %v704, %v736
    %v767 = vsel %vm572, %v706, %v738
    %v768 = vsel %vm572, %v708, %v740
    %v769 = vsel %vm572, %v710, %v742
    %v770 = vsel %vm572, %v712, %v744
    %v771 = vsel %vm572, %v714, %v746
    %v772 = vsel %vm572, %v716, %v748
    %v773 = vsel %vm572, %v718, %v750
    %v774 = vsel %vm572, %v720, %v752
    %v775 = vsel %vm572, %v722, %v754
    %v776 = vsel %vm572, %v724, %v756
    %v777 = vsel %vm572, %v726, %v758
    %v778 = vsel %vm572, %v728, %v760
    %v779 = vsel %vm572, %v730, %v762
    %v780 = vsel %vm572, %v732, %v764
    %v781 = vsel %vm572, %v734, %v702
    %v782 = vsel %vm572, %v736, %v704
    %v783 = vsel %vm572, %v738, %v706
    %v784 = vsel %vm572, %v740, %v708
    %v785 = vsel %vm572, %v742, %v710
    %v786 = vsel %vm572, %v744, %v712
    %v787 = vsel %vm572, %v746, %v714
    %v788 = vsel %vm572, %v748, %v716
    %v789 = vsel %vm572, %v750, %v718
    %v790 = vsel %vm572, %v752, %v720
    %v791 = vsel %vm572, %v754, %v722
    %v792 = vsel %vm572, %v756, %v724
    %v793 = vsel %vm572, %v758, %v726
    %v794 = vsel %vm572, %v760, %v728
    %v795 = vsel %vm572, %v762, %v730
    %v796 = vsel %vm572, %v764, %v732
    %v797 = vadd.s32 %v474, 128
    %vm798 = vcmp.gt.s32.totalorder %v474, 0
    %vm799 = vcmp.gt.s32.totalorder %v797, 0
    %vm800 = vcmp.lt.s32.totalorder %v474, 255
    %vm801 = vcmp.lt.s32.totalorder %v797, 255
    %v802 = vsel %vm798, 1, 0
    %v803 = vsel %vm799, 1, 0
    %vm804 = vcmp.eq.s32.totalorder %v802, 1
    %vm805 = vcmp.eq.s32.totalorder %v803, 1
    %v806 = vsel %vm804, %v492, 0.0
    %v807 = vsel %vm805, %v476, 0.0
    %v808 = vsel %vm804, %v493, 0.0
    %v809 = vsel %vm805, %v477, 0.0
    %v810 = vsel %vm804, %v494, 0.0
    %v811 = vsel %vm805, %v478, 0.0
    %v812 = vsel %vm804, %v495, 0.0
    %v813 = vsel %vm805, %v479, 0.0
    %v814 = vsel %vm804, %v496, 0.0
    %v815 = vsel %vm805, %v480, 0.0
    %v816 = vsel %vm804, %v497, 0.0
    %v817 = vsel %vm805, %v481, 0.0
    %v818 = vsel %vm804, %v498, 0.0
    %v819 = vsel %vm805, %v482, 0.0
    %v820 = vsel %vm804, %v499, 0.0
    %v821 = vsel %vm805, %v483, 0.0
    %v822 = vsel %vm804, %v500, 0.0
    %v823 = vsel %vm805, %v484, 0.0
    %v824 = vsel %vm804, %v501, 0.0
    %v825 = vsel %vm805, %v485, 0.0
    %v826 = vsel %vm804, %v502, 0.0
    %v827 = vsel %vm805, %v486, 0.0
    %v828 = vsel %vm804, %v503, 0.0
    %v829 = vsel %vm805, %v487, 0.0
    %v830 = vsel %vm804, %v504, 0.0
    %v831 = vsel %vm805, %v488, 0.0
    %v832 = vsel %vm804, %v505, 0.0
    %v833 = vsel %vm805, %v489, 0.0
    %v834 = vsel %vm804, %v506, 0.0
    %v835 = vsel %vm805, %v490, 0.0
    %v836 = vsel %vm804, %v507, 0.0
    %v837 = vsel %vm805, %v491, 0.0
    %v838 = vsel %vm804, %v685, 0.0
    %v839 = vsel %vm805, %v669, 0.0
    %v840 = vsel %vm804, %v686, 0.0
    %v841 = vsel %vm805, %v670, 0.0
    %v842 = vsel %vm804, %v687, 0.0
    %v843 = vsel %vm805, %v671, 0.0
    %v844 = vsel %vm804, %v688, 0.0
    %v845 = vsel %vm805, %v672, 0.0
    %v846 = vsel %vm804, %v689, 0.0
    %v847 = vsel %vm805, %v673, 0.0
    %v848 = vsel %vm804, %v690, 0.0
    %v849 = vsel %vm805, %v674, 0.0
    %v850 = vsel %vm804, %v691, 0.0
    %v851 = vsel %vm805, %v675, 0.0
    %v852 = vsel %vm804, %v692, 0.0
    %v853 = vsel %vm805, %v676, 0.0
    %v854 = vsel %vm804, %v693, 0.0
    %v855 = vsel %vm805, %v677, 0.0
    %v856 = vsel %vm804, %v694, 0.0
    %v857 = vsel %vm805, %v678, 0.0
    %v858 = vsel %vm804, %v695, 0.0
    %v859 = vsel %vm805, %v679, 0.0
    %v860 = vsel %vm804, %v696, 0.0
    %v861 = vsel %vm805, %v680, 0.0
    %v862 = vsel %vm804, %v697, 0.0
    %v863 = vsel %vm805, %v681, 0.0
    %v864 = vsel %vm804, %v698, 0.0
    %v865 = vsel %vm805, %v682, 0.0
    %v866 = vsel %vm804, %v699, 0.0
    %v867 = vsel %vm805, %v683, 0.0
    %v868 = vsel %vm804, %v700, 0.0
    %v869 = vsel %vm805, %v684, 0.0
    %v870 = vsel %vm800, 1, 0
    %v871 = vsel %vm801, 1, 0
    %vm872 = vcmp.eq.s32.totalorder %v870, 1
    %vm873 = vcmp.eq.s32.totalorder %v871, 1
    %v874 = vsel %vm872, %v573, 0.0
    %v875 = vsel %vm873, %v589, 0.0
    %v876 = vsel %vm872, %v574, 0.0
    %v877 = vsel %vm873, %v590, 0.0
    %v878 = vsel %vm872, %v575, 0.0
    %v879 = vsel %vm873, %v591, 0.0
    %v880 = vsel %vm872, %v576, 0.0
    %v881 = vsel %vm873, %v592, 0.0
    %v882 = vsel %vm872, %v577, 0.0
    %v883 = vsel %vm873, %v593, 0.0
    %v884 = vsel %vm872, %v578, 0.0
    %v885 = vsel %vm873, %v594, 0.0
    %v886 = vsel %vm872, %v579, 0.0
    %v887 = vsel %vm873, %v595, 0.0
    %v888 = vsel %vm872, %v580, 0.0
    %v889 = vsel %vm873, %v596, 0.0
    %v890 = vsel %vm872, %v581, 0.0
    %v891 = vsel %vm873, %v597, 0.0
    %v892 = vsel %vm872, %v582, 0.0
    %v893 = vsel %vm873, %v598, 0.0
    %v894 = vsel %vm872, %v583, 0.0
    %v895 = vsel %vm873, %v599, 0.0
    %v896 = vsel %vm872, %v584, 0.0
    %v897 = vsel %vm873, %v600, 0.0
    %v898 = vsel %vm872, %v585, 0.0
    %v899 = vsel %vm873, %v601, 0.0
    %v900 = vsel %vm872, %v586, 0.0
    %v901 = vsel %vm873, %v602, 0.0
    %v902 = vsel %vm872, %v587, 0.0
    %v903 = vsel %vm873, %v603, 0.0
    %v904 = vsel %vm872, %v588, 0.0
    %v905 = vsel %vm873, %v604, 0.0
    %v906 = vsel %vm872, %v765, 0.0
    %v907 = vsel %vm873, %v781, 0.0
    %v908 = vsel %vm872, %v766, 0.0
    %v909 = vsel %vm873, %v782, 0.0
    %v910 = vsel %vm872, %v767, 0.0
    %v911 = vsel %vm873, %v783, 0.0
    %v912 = vsel %vm872, %v768, 0.0
    %v913 = vsel %vm873, %v784, 0.0
    %v914 = vsel %vm872, %v769, 0.0
    %v915 = vsel %vm873, %v785, 0.0
    %v916 = vsel %vm872, %v770, 0.0
    %v917 = vsel %vm873, %v786, 0.0
    %v918 = vsel %vm872, %v771, 0.0
    %v919 = vsel %vm873, %v787, 0.0
    %v920 = vsel %vm872, %v772, 0.0
    %v921 = vsel %vm873, %v788, 0.0
    %v922 = vsel %vm872, %v773, 0.0
    %v923 = vsel %vm873, %v789, 0.0
    %v924 = vsel %vm872, %v774, 0.0
    %v925 = vsel %vm873, %v790, 0.0
    %v926 = vsel %vm872, %v775, 0.0
    %v927 = vsel %vm873, %v791, 0.0
    %v928 = vsel %vm872, %v776, 0.0
    %v929 = vsel %vm873, %v792, 0.0
    %v930 = vsel %vm872, %v777, 0.0
    %v931 = vsel %vm873, %v793, 0.0
    %v932 = vsel %vm872, %v778, 0.0
    %v933 = vsel %vm873, %v794, 0.0
    %v934 = vsel %vm872, %v779, 0.0
    %v935 = vsel %vm873, %v795, 0.0
    %v936 = vsel %vm872, %v780, 0.0
    %v937 = vsel %vm873, %v796, 0.0
    %v938 = vsub.f32 %v874, %v806
    %v939 = vsub.f32 %v875, %v807
    %v940 = vsub.f32 %v876, %v808
    %v941 = vsub.f32 %v877, %v809
    %v942 = vsub.f32 %v878, %v810
    %v943 = vsub.f32 %v879, %v811
    %v944 = vsub.f32 %v880, %v812
    %v945 = vsub.f32 %v881, %v813
    %v946 = vsub.f32 %v882, %v814
    %v947 = vsub.f32 %v883, %v815
    %v948 = vsub.f32 %v884, %v816
    %v949 = vsub.f32 %v885, %v817
    %v950 = vsub.f32 %v886, %v818
    %v951 = vsub.f32 %v887, %v819
    %v952 = vsub.f32 %v888, %v820
    %v953 = vsub.f32 %v889, %v821
    %v954 = vsub.f32 %v890, %v822
    %v955 = vsub.f32 %v891, %v823
    %v956 = vsub.f32 %v892, %v824
    %v957 = vsub.f32 %v893, %v825
    %v958 = vsub.f32 %v894, %v826
    %v959 = vsub.f32 %v895, %v827
    %v960 = vsub.f32 %v896, %v828
    %v961 = vsub.f32 %v897, %v829
    %v962 = vsub.f32 %v898, %v830
    %v963 = vsub.f32 %v899, %v831
    %v964 = vsub.f32 %v900, %v832
    %v965 = vsub.f32 %v901, %v833
    %v966 = vsub.f32 %v902, %v834
    %v967 = vsub.f32 %v903, %v835
    %v968 = vsub.f32 %v904, %v836
    %v969 = vsub.f32 %v905, %v837
    %v970 = vadd.f32 %v377, %v377
    %v971 = vadd.f32 %v378, %v378
    %v972 = vadd.f32 %v379, %v379
    %v973 = vadd.f32 %v380, %v380
    %v974 = vadd.f32 %v381, %v381
    %v975 = vadd.f32 %v382, %v382
    %v976 = vadd.f32 %v383, %v383
    %v977 = vadd.f32 %v384, %v384
    %v978 = vadd.f32 %v385, %v385
    %v979 = vadd.f32 %v386, %v386
    %v980 = vadd.f32 %v387, %v387
    %v981 = vadd.f32 %v388, %v388
    %v982 = vadd.f32 %v389, %v389
    %v983 = vadd.f32 %v390, %v390
    %v984 = vadd.f32 %v391, %v391
    %v985 = vadd.f32 %v392, %v392
    %v986 = vadd.f32 %v393, %v393
    %v987 = vadd.f32 %v394, %v394
    %v988 = vadd.f32 %v395, %v395
    %v989 = vadd.f32 %v396, %v396
    %v990 = vadd.f32 %v397, %v397
    %v991 = vadd.f32 %v398, %v398
    %v992 = vadd.f32 %v399, %v399
    %v993 = vadd.f32 %v400, %v400
    %v994 = vadd.f32 %v401, %v401
    %v995 = vadd.f32 %v402, %v402
    %v996 = vadd.f32 %v403, %v403
    %v997 = vadd.f32 %v404, %v404
    %v998 = vadd.f32 %v405, %v405
    %v999 = vadd.f32 %v406, %v406
    %v1000 = vadd.f32 %v407, %v407
    %v1001 = vadd.f32 %v408, %v408
    %v1002 = vadd.f32 %v838, %v970
    %v1003 = vadd.f32 %v839, %v971
    %v1004 = vadd.f32 %v840, %v972
    %v1005 = vadd.f32 %v841, %v973
    %v1006 = vadd.f32 %v842, %v974
    %v1007 = vadd.f32 %v843, %v975
    %v1008 = vadd.f32 %v844, %v976
    %v1009 = vadd.f32 %v845, %v977
    %v1010 = vadd.f32 %v846, %v978
    %v1011 = vadd.f32 %v847, %v979
    %v1012 = vadd.f32 %v848, %v980
    %v1013 = vadd.f32 %v849, %v981
    %v1014 = vadd.f32 %v850, %v982
    %v1015 = vadd.f32 %v851, %v983
    %v1016 = vadd.f32 %v852, %v984
    %v1017 = vadd.f32 %v853, %v985
    %v1018 = vadd.f32 %v854, %v986
    %v1019 = vadd.f32 %v855, %v987
    %v1020 = vadd.f32 %v856, %v988
    %v1021 = vadd.f32 %v857, %v989
    %v1022 = vadd.f32 %v858, %v990
    %v1023 = vadd.f32 %v859, %v991
    %v1024 = vadd.f32 %v860, %v992
    %v1025 = vadd.f32 %v861, %v993
    %v1026 = vadd.f32 %v862, %v994
    %v1027 = vadd.f32 %v863, %v995
    %v1028 = vadd.f32 %v864, %v996
    %v1029 = vadd.f32 %v865, %v997
    %v1030 = vadd.f32 %v866, %v998
    %v1031 = vadd.f32 %v867, %v999
    %v1032 = vadd.f32 %v868, %v1000
    %v1033 = vadd.f32 %v869, %v1001
    %v1034 = vadd.f32 %v1002, %v906
    %v1035 = vadd.f32 %v1003, %v907
    %v1036 = vadd.f32 %v1004, %v908
    %v1037 = vadd.f32 %v1005, %v909
    %v1038 = vadd.f32 %v1006, %v910
    %v1039 = vadd.f32 %v1007, %v911
    %v1040 = vadd.f32 %v1008, %v912
    %v1041 = vadd.f32 %v1009, %v913
    %v1042 = vadd.f32 %v1010, %v914
    %v1043 = vadd.f32 %v1011, %v915
    %v1044 = vadd.f32 %v1012, %v916
    %v1045 = vadd.f32 %v1013, %v917
    %v1046 = vadd.f32 %v1014, %v918
    %v1047 = vadd.f32 %v1015, %v919
    %v1048 = vadd.f32 %v1016, %v920
    %v1049 = vadd.f32 %v1017, %v921
    %v1050 = vadd.f32 %v1018, %v922
    %v1051 = vadd.f32 %v1019, %v923
    %v1052 = vadd.f32 %v1020, %v924
    %v1053 = vadd.f32 %v1021, %v925
    %v1054 = vadd.f32 %v1022, %v926
    %v1055 = vadd.f32 %v1023, %v927
    %v1056 = vadd.f32 %v1024, %v928
    %v1057 = vadd.f32 %v1025, %v929
    %v1058 = vadd.f32 %v1026, %v930
    %v1059 = vadd.f32 %v1027, %v931
    %v1060 = vadd.f32 %v1028, %v932
    %v1061 = vadd.f32 %v1029, %v933
    %v1062 = vadd.f32 %v1030, %v934
    %v1063 = vadd.f32 %v1031, %v935
    %v1064 = vadd.f32 %v1032, %v936
    %v1065 = vadd.f32 %v1033, %v937
    %v1066 = vmul.f32 %v938, %v938
    %v1067 = vmul.f32 %v939, %v939
    %v1068 = vmul.f32 %v940, %v940
    %v1069 = vmul.f32 %v941, %v941
    %v1070 = vmul.f32 %v942, %v942
    %v1071 = vmul.f32 %v943, %v943
    %v1072 = vmul.f32 %v944, %v944
    %v1073 = vmul.f32 %v945, %v945
    %v1074 = vmul.f32 %v946, %v946
    %v1075 = vmul.f32 %v947, %v947
    %v1076 = vmul.f32 %v948, %v948
    %v1077 = vmul.f32 %v949, %v949
    %v1078 = vmul.f32 %v950, %v950
    %v1079 = vmul.f32 %v951, %v951
    %v1080 = vmul.f32 %v952, %v952
    %v1081 = vmul.f32 %v953, %v953
    %v1082 = vmul.f32 %v954, %v954
    %v1083 = vmul.f32 %v955, %v955
    %v1084 = vmul.f32 %v956, %v956
    %v1085 = vmul.f32 %v957, %v957
    %v1086 = vmul.f32 %v958, %v958
    %v1087 = vmul.f32 %v959, %v959
    %v1088 = vmul.f32 %v960, %v960
    %v1089 = vmul.f32 %v961, %v961
    %v1090 = vmul.f32 %v962, %v962
    %v1091 = vmul.f32 %v963, %v963
    %v1092 = vmul.f32 %v964, %v964
    %v1093 = vmul.f32 %v965, %v965
    %v1094 = vmul.f32 %v966, %v966
    %v1095 = vmul.f32 %v967, %v967
    %v1096 = vmul.f32 %v968, %v968
    %v1097 = vmul.f32 %v969, %v969
    %v1098 = vmul.f32 %v1034, %v1034
    %v1099 = vmul.f32 %v1035, %v1035
    %v1100 = vmul.f32 %v1036, %v1036
    %v1101 = vmul.f32 %v1037, %v1037
    %v1102 = vmul.f32 %v1038, %v1038
    %v1103 = vmul.f32 %v1039, %v1039
    %v1104 = vmul.f32 %v1040, %v1040
    %v1105 = vmul.f32 %v1041, %v1041
    %v1106 = vmul.f32 %v1042, %v1042
    %v1107 = vmul.f32 %v1043, %v1043
    %v1108 = vmul.f32 %v1044, %v1044
    %v1109 = vmul.f32 %v1045, %v1045
    %v1110 = vmul.f32 %v1046, %v1046
    %v1111 = vmul.f32 %v1047, %v1047
    %v1112 = vmul.f32 %v1048, %v1048
    %v1113 = vmul.f32 %v1049, %v1049
    %v1114 = vmul.f32 %v1050, %v1050
    %v1115 = vmul.f32 %v1051, %v1051
    %v1116 = vmul.f32 %v1052, %v1052
    %v1117 = vmul.f32 %v1053, %v1053
    %v1118 = vmul.f32 %v1054, %v1054
    %v1119 = vmul.f32 %v1055, %v1055
    %v1120 = vmul.f32 %v1056, %v1056
    %v1121 = vmul.f32 %v1057, %v1057
    %v1122 = vmul.f32 %v1058, %v1058
    %v1123 = vmul.f32 %v1059, %v1059
    %v1124 = vmul.f32 %v1060, %v1060
    %v1125 = vmul.f32 %v1061, %v1061
    %v1126 = vmul.f32 %v1062, %v1062
    %v1127 = vmul.f32 %v1063, %v1063
    %v1128 = vmul.f32 %v1064, %v1064
    %v1129 = vmul.f32 %v1065, %v1065
    %v1130 = vadd.f32 %v1066, %v1098
    %v1131 = vadd.f32 %v1067, %v1099
    %v1132 = vadd.f32 %v1068, %v1100
    %v1133 = vadd.f32 %v1069, %v1101
    %v1134 = vadd.f32 %v1070, %v1102
    %v1135 = vadd.f32 %v1071, %v1103
    %v1136 = vadd.f32 %v1072, %v1104
    %v1137 = vadd.f32 %v1073, %v1105
    %v1138 = vadd.f32 %v1074, %v1106
    %v1139 = vadd.f32 %v1075, %v1107
    %v1140 = vadd.f32 %v1076, %v1108
    %v1141 = vadd.f32 %v1077, %v1109
    %v1142 = vadd.f32 %v1078, %v1110
    %v1143 = vadd.f32 %v1079, %v1111
    %v1144 = vadd.f32 %v1080, %v1112
    %v1145 = vadd.f32 %v1081, %v1113
    %v1146 = vadd.f32 %v1082, %v1114
    %v1147 = vadd.f32 %v1083, %v1115
    %v1148 = vadd.f32 %v1084, %v1116
    %v1149 = vadd.f32 %v1085, %v1117
    %v1150 = vadd.f32 %v1086, %v1118
    %v1151 = vadd.f32 %v1087, %v1119
    %v1152 = vadd.f32 %v1088, %v1120
    %v1153 = vadd.f32 %v1089, %v1121
    %v1154 = vadd.f32 %v1090, %v1122
    %v1155 = vadd.f32 %v1091, %v1123
    %v1156 = vadd.f32 %v1092, %v1124
    %v1157 = vadd.f32 %v1093, %v1125
    %v1158 = vadd.f32 %v1094, %v1126
    %v1159 = vadd.f32 %v1095, %v1127
    %v1160 = vadd.f32 %v1096, %v1128
    %v1161 = vadd.f32 %v1097, %v1129
    %v1162 = vrsqrt.pop %v1130
    %v1163 = vmul.f32 %v1130, %v1162
    %vm1164 = vcmp.eq.f32.partialorder %v1130, inf
    %v1165 = vsel %vm1164, %v1130, %v1163
    %vm1166 = vcmp.eq.f32.partialorder %v1130, 0.0
    %v1167 = vand.u32 %v1130, 2147483648
    %v1168 = vsel %vm1166, %v1167, %v1165
    %v1169 = vrsqrt.pop %v1131
    %v1170 = vmul.f32 %v1131, %v1169
    %vm1171 = vcmp.eq.f32.partialorder %v1131, inf
    %v1172 = vsel %vm1171, %v1131, %v1170
    %vm1173 = vcmp.eq.f32.partialorder %v1131, 0.0
    %v1174 = vand.u32 %v1131, 2147483648
    %v1175 = vsel %vm1173, %v1174, %v1172
    %v1176 = vrsqrt.pop %v1132
    %v1177 = vmul.f32 %v1132, %v1176
    %vm1178 = vcmp.eq.f32.partialorder %v1132, inf
    %v1179 = vsel %vm1178, %v1132, %v1177
    %vm1180 = vcmp.eq.f32.partialorder %v1132, 0.0
    %v1181 = vand.u32 %v1132, 2147483648
    %v1182 = vsel %vm1180, %v1181, %v1179
    %v1183 = vrsqrt.pop %v1133
    %v1184 = vmul.f32 %v1133, %v1183
    %vm1185 = vcmp.eq.f32.partialorder %v1133, inf
    %v1186 = vsel %vm1185, %v1133, %v1184
    %vm1187 = vcmp.eq.f32.partialorder %v1133, 0.0
    %v1188 = vand.u32 %v1133, 2147483648
    %v1189 = vsel %vm1187, %v1188, %v1186
    %v1190 = vrsqrt.pop %v1134
    %v1191 = vmul.f32 %v1134, %v1190
    %vm1192 = vcmp.eq.f32.partialorder %v1134, inf
    %v1193 = vsel %vm1192, %v1134, %v1191
    %vm1194 = vcmp.eq.f32.partialorder %v1134, 0.0
    %v1195 = vand.u32 %v1134, 2147483648
    %v1196 = vsel %vm1194, %v1195, %v1193
    %v1197 = vrsqrt.pop %v1135
    %v1198 = vmul.f32 %v1135, %v1197
    %vm1199 = vcmp.eq.f32.partialorder %v1135, inf
    %v1200 = vsel %vm1199, %v1135, %v1198
    %vm1201 = vcmp.eq.f32.partialorder %v1135, 0.0
    %v1202 = vand.u32 %v1135, 2147483648
    %v1203 = vsel %vm1201, %v1202, %v1200
    %v1204 = vrsqrt.pop %v1136
    %v1205 = vmul.f32 %v1136, %v1204
    %vm1206 = vcmp.eq.f32.partialorder %v1136, inf
    %v1207 = vsel %vm1206, %v1136, %v1205
    %vm1208 = vcmp.eq.f32.partialorder %v1136, 0.0
    %v1209 = vand.u32 %v1136, 2147483648
    %v1210 = vsel %vm1208, %v1209, %v1207
    %v1211 = vrsqrt.pop %v1137
    %v1212 = vmul.f32 %v1137, %v1211
    %vm1213 = vcmp.eq.f32.partialorder %v1137, inf
    %v1214 = vsel %vm1213, %v1137, %v1212
    %vm1215 = vcmp.eq.f32.partialorder %v1137, 0.0
    %v1216 = vand.u32 %v1137, 2147483648
    %v1217 = vsel %vm1215, %v1216, %v1214
    %v1218 = vrsqrt.pop %v1138
    %v1219 = vmul.f32 %v1138, %v1218
    %vm1220 = vcmp.eq.f32.partialorder %v1138, inf
    %v1221 = vsel %vm1220, %v1138, %v1219
    %vm1222 = vcmp.eq.f32.partialorder %v1138, 0.0
    %v1223 = vand.u32 %v1138, 2147483648
    %v1224 = vsel %vm1222, %v1223, %v1221
    %v1225 = vrsqrt.pop %v1139
    %v1226 = vmul.f32 %v1139, %v1225
    %vm1227 = vcmp.eq.f32.partialorder %v1139, inf
    %v1228 = vsel %vm1227, %v1139, %v1226
    %vm1229 = vcmp.eq.f32.partialorder %v1139, 0.0
    %v1230 = vand.u32 %v1139, 2147483648
    %v1231 = vsel %vm1229, %v1230, %v1228
    %v1232 = vrsqrt.pop %v1140
    %v1233 = vmul.f32 %v1140, %v1232
    %vm1234 = vcmp.eq.f32.partialorder %v1140, inf
    %v1235 = vsel %vm1234, %v1140, %v1233
    %vm1236 = vcmp.eq.f32.partialorder %v1140, 0.0
    %v1237 = vand.u32 %v1140, 2147483648
    %v1238 = vsel %vm1236, %v1237, %v1235
    %v1239 = vrsqrt.pop %v1141
    %v1240 = vmul.f32 %v1141, %v1239
    %vm1241 = vcmp.eq.f32.partialorder %v1141, inf
    %v1242 = vsel %vm1241, %v1141, %v1240
    %vm1243 = vcmp.eq.f32.partialorder %v1141, 0.0
    %v1244 = vand.u32 %v1141, 2147483648
    %v1245 = vsel %vm1243, %v1244, %v1242
    %v1246 = vrsqrt.pop %v1142
    %v1247 = vmul.f32 %v1142, %v1246
    %vm1248 = vcmp.eq.f32.partialorder %v1142, inf
    %v1249 = vsel %vm1248, %v1142, %v1247
    %vm1250 = vcmp.eq.f32.partialorder %v1142, 0.0
    %v1251 = vand.u32 %v1142, 2147483648
    %v1252 = vsel %vm1250, %v1251, %v1249
    %v1253 = vrsqrt.pop %v1143
    %v1254 = vmul.f32 %v1143, %v1253
    %vm1255 = vcmp.eq.f32.partialorder %v1143, inf
    %v1256 = vsel %vm1255, %v1143, %v1254
    %vm1257 = vcmp.eq.f32.partialorder %v1143, 0.0
    %v1258 = vand.u32 %v1143, 2147483648
    %v1259 = vsel %vm1257, %v1258, %v1256
    %v1260 = vrsqrt.pop %v1144
    %v1261 = vmul.f32 %v1144, %v1260
    %vm1262 = vcmp.eq.f32.partialorder %v1144, inf
    %v1263 = vsel %vm1262, %v1144, %v1261
    %vm1264 = vcmp.eq.f32.partialorder %v1144, 0.0
    %v1265 = vand.u32 %v1144, 2147483648
    %v1266 = vsel %vm1264, %v1265, %v1263
    %v1267 = vrsqrt.pop %v1145
    %v1268 = vmul.f32 %v1145, %v1267
    %vm1269 = vcmp.eq.f32.partialorder %v1145, inf
    %v1270 = vsel %vm1269, %v1145, %v1268
    %vm1271 = vcmp.eq.f32.partialorder %v1145, 0.0
    %v1272 = vand.u32 %v1145, 2147483648
    %v1273 = vsel %vm1271, %v1272, %v1270
    %v1274 = vrsqrt.pop %v1146
    %v1275 = vmul.f32 %v1146, %v1274
    %vm1276 = vcmp.eq.f32.partialorder %v1146, inf
    %v1277 = vsel %vm1276, %v1146, %v1275
    %vm1278 = vcmp.eq.f32.partialorder %v1146, 0.0
    %v1279 = vand.u32 %v1146, 2147483648
    %v1280 = vsel %vm1278, %v1279, %v1277
    %v1281 = vrsqrt.pop %v1147
    %v1282 = vmul.f32 %v1147, %v1281
    %vm1283 = vcmp.eq.f32.partialorder %v1147, inf
    %v1284 = vsel %vm1283, %v1147, %v1282
    %vm1285 = vcmp.eq.f32.partialorder %v1147, 0.0
    %v1286 = vand.u32 %v1147, 2147483648
    %v1287 = vsel %vm1285, %v1286, %v1284
    %v1288 = vrsqrt.pop %v1148
    %v1289 = vmul.f32 %v1148, %v1288
    %vm1290 = vcmp.eq.f32.partialorder %v1148, inf
    %v1291 = vsel %vm1290, %v1148, %v1289
    %vm1292 = vcmp.eq.f32.partialorder %v1148, 0.0
    %v1293 = vand.u32 %v1148, 2147483648
    %v1294 = vsel %vm1292, %v1293, %v1291
    %v1295 = vrsqrt.pop %v1149
    %v1296 = vmul.f32 %v1149, %v1295
    %vm1297 = vcmp.eq.f32.partialorder %v1149, inf
    %v1298 = vsel %vm1297, %v1149, %v1296
    %vm1299 = vcmp.eq.f32.partialorder %v1149, 0.0
    %v1300 = vand.u32 %v1149, 2147483648
    %v1301 = vsel %vm1299, %v1300, %v1298
    %v1302 = vrsqrt.pop %v1150
    %v1303 = vmul.f32 %v1150, %v1302
    %vm1304 = vcmp.eq.f32.partialorder %v1150, inf
    %v1305 = vsel %vm1304, %v1150, %v1303
    %vm1306 = vcmp.eq.f32.partialorder %v1150, 0.0
    %v1307 = vand.u32 %v1150, 2147483648
    %v1308 = vsel %vm1306, %v1307, %v1305
    %v1309 = vrsqrt.pop %v1151
    %v1310 = vmul.f32 %v1151, %v1309
    %vm1311 = vcmp.eq.f32.partialorder %v1151, inf
    %v1312 = vsel %vm1311, %v1151, %v1310
    %vm1313 = vcmp.eq.f32.partialorder %v1151, 0.0
    %v1314 = vand.u32 %v1151, 2147483648
    %v1315 = vsel %vm1313, %v1314, %v1312
    %v1316 = vrsqrt.pop %v1152
    %v1317 = vmul.f32 %v1152, %v1316
    %vm1318 = vcmp.eq.f32.partialorder %v1152, inf
    %v1319 = vsel %vm1318, %v1152, %v1317
    %vm1320 = vcmp.eq.f32.partialorder %v1152, 0.0
    %v1321 = vand.u32 %v1152, 2147483648
    %v1322 = vsel %vm1320, %v1321, %v1319
    %v1323 = vrsqrt.pop %v1153
    %v1324 = vmul.f32 %v1153, %v1323
    %vm1325 = vcmp.eq.f32.partialorder %v1153, inf
    %v1326 = vsel %vm1325, %v1153, %v1324
    %vm1327 = vcmp.eq.f32.partialorder %v1153, 0.0
    %v1328 = vand.u32 %v1153, 2147483648
    %v1329 = vsel %vm1327, %v1328, %v1326
    %v1330 = vrsqrt.pop %v1154
    %v1331 = vmul.f32 %v1154, %v1330
    %vm1332 = vcmp.eq.f32.partialorder %v1154, inf
    %v1333 = vsel %vm1332, %v1154, %v1331
    %vm1334 = vcmp.eq.f32.partialorder %v1154, 0.0
    %v1335 = vand.u32 %v1154, 2147483648
    %v1336 = vsel %vm1334, %v1335, %v1333
    %v1337 = vrsqrt.pop %v1155
    %v1338 = vmul.f32 %v1155, %v1337
    %vm1339 = vcmp.eq.f32.partialorder %v1155, inf
    %v1340 = vsel %vm1339, %v1155, %v1338
    %vm1341 = vcmp.eq.f32.partialorder %v1155, 0.0
    %v1342 = vand.u32 %v1155, 2147483648
    %v1343 = vsel %vm1341, %v1342, %v1340
    %v1344 = vrsqrt.pop %v1156
    %v1345 = vmul.f32 %v1156, %v1344
    %vm1346 = vcmp.eq.f32.partialorder %v1156, inf
    %v1347 = vsel %vm1346, %v1156, %v1345
    %vm1348 = vcmp.eq.f32.partialorder %v1156, 0.0
    %v1349 = vand.u32 %v1156, 2147483648
    %v1350 = vsel %vm1348, %v1349, %v1347
    %v1351 = vrsqrt.pop %v1157
    %v1352 = vmul.f32 %v1157, %v1351
    %vm1353 = vcmp.eq.f32.partialorder %v1157, inf
    %v1354 = vsel %vm1353, %v1157, %v1352
    %vm1355 = vcmp.eq.f32.partialorder %v1157, 0.0
    %v1356 = vand.u32 %v1157, 2147483648
    %v1357 = vsel %vm1355, %v1356, %v1354
    %v1358 = vrsqrt.pop %v1158
    %v1359 = vmul.f32 %v1158, %v1358
    %vm1360 = vcmp.eq.f32.partialorder %v1158, inf
    %v1361 = vsel %vm1360, %v1158, %v1359
    %vm1362 = vcmp.eq.f32.partialorder %v1158, 0.0
    %v1363 = vand.u32 %v1158, 2147483648
    %v1364 = vsel %vm1362, %v1363, %v1361
    %v1365 = vrsqrt.pop %v1159
    %v1366 = vmul.f32 %v1159, %v1365
    %vm1367 = vcmp.eq.f32.partialorder %v1159, inf
    %v1368 = vsel %vm1367, %v1159, %v1366
    %vm1369 = vcmp.eq.f32.partialorder %v1159, 0.0
    %v1370 = vand.u32 %v1159, 2147483648
    %v1371 = vsel %vm1369, %v1370, %v1368
    %v1372 = vrsqrt.pop %v1160
    %v1373 = vmul.f32 %v1160, %v1372
    %vm1374 = vcmp.eq.f32.partialorder %v1160, inf
    %v1375 = vsel %vm1374, %v1160, %v1373
    %vm1376 = vcmp.eq.f32.partialorder %v1160, 0.0
    %v1377 = vand.u32 %v1160, 2147483648
    %v1378 = vsel %vm1376, %v1377, %v1375
    %v1379 = vrsqrt.pop %v1161
    %v1380 = vmul.f32 %v1161, %v1379
    %vm1381 = vcmp.eq.f32.partialorder %v1161, inf
    %v1382 = vsel %vm1381, %v1161, %v1380
    %vm1383 = vcmp.eq.f32.partialorder %v1161, 0.0
    %v1384 = vand.u32 %v1161, 2147483648
    %v1385 = vsel %vm1383, %v1384, %v1382
    %v1386 = vmax.f32 %v1168, %v1196
    %v1387 = vmax.f32 %v1175, %v1203
    %v1388 = vmax.f32 %v1182, %v1210
    %v1389 = vmax.f32 %v1189, %v1217
    %v1390 = vmax.f32 %v1386, %v1224
    %v1391 = vmax.f32 %v1387, %v1231
    %v1392 = vmax.f32 %v1388, %v1238
    %v1393 = vmax.f32 %v1389, %v1245
    %v1394 = vmax.f32 %v1390, %v1252
    %v1395 = vmax.f32 %v1391, %v1259
    %v1396 = vmax.f32 %v1392, %v1266
    %v1397 = vmax.f32 %v1393, %v1273
    %v1398 = vmax.f32 %v1394, %v1280
    %v1399 = vmax.f32 %v1395, %v1287
    %v1400 = vmax.f32 %v1396, %v1294
    %v1401 = vmax.f32 %v1397, %v1301
    %v1402 = vmax.f32 %v1398, %v1308
    %v1403 = vmax.f32 %v1399, %v1315
    %v1404 = vmax.f32 %v1400, %v1322
    %v1405 = vmax.f32 %v1401, %v1329
    %v1406 = vmax.f32 %v1402, %v1336
    %v1407 = vmax.f32 %v1403, %v1343
    %v1408 = vmax.f32 %v1404, %v1350
    %v1409 = vmax.f32 %v1405, %v1357
    %v1410 = vmax.f32 %v1406, %v1364
    %v1411 = vmax.f32 %v1407, %v1371
    %v1412 = vmax.f32 %v1408, %v1378
    %v1413 = vmax.f32 %v1409, %v1385
    %v1414 = vmax.f32 %v1410, %v1411
    %v1415 = vmax.f32 %v1412, %v1413
    %v1416 = vmax.f32 %v1414, %v1415
    %1417 = vmax.xlane.f32.xlu0 %v1416
    %v1418 = vpop.xlane.xlu0 %1417
    %v1419 = vrot.slane %v1418, 4
    %v1420 = vmax.f32 %v1418, %v1419
    %v1421 = vrot.slane %v1420, 2
    %v1422 = vmax.f32 %v1420, %v1421
    %v1423 = vrot.slane %v1422, 1
    %v1424 = vmax.f32 %v1422, %v1423
    %s1425 = vtos %v1424
    %v1426 = vstv %s1425
    %v1427 = vrcp.pop %v1426
    %s1428 = vtos %v1427
    %v1429 = vstv %s1428
    %v1430 = vmul.f32 %v1168, %v1429
    %v1431 = vmul.f32 %v1175, %v1429
    %v1432 = vmul.f32 %v1182, %v1429
    %v1433 = vmul.f32 %v1189, %v1429
    %v1434 = vmul.f32 %v1196, %v1429
    %v1435 = vmul.f32 %v1203, %v1429
    %v1436 = vmul.f32 %v1210, %v1429
    %v1437 = vmul.f32 %v1217, %v1429
    %v1438 = vmul.f32 %v1224, %v1429
    %v1439 = vmul.f32 %v1231, %v1429
    %v1440 = vmul.f32 %v1238, %v1429
    %v1441 = vmul.f32 %v1245, %v1429
    %v1442 = vmul.f32 %v1252, %v1429
    %v1443 = vmul.f32 %v1259, %v1429
    %v1444 = vmul.f32 %v1266, %v1429
    %v1445 = vmul.f32 %v1273, %v1429
    %v1446 = vmul.f32 %v1280, %v1429
    %v1447 = vmul.f32 %v1287, %v1429
    %v1448 = vmul.f32 %v1294, %v1429
    %v1449 = vmul.f32 %v1301, %v1429
    %v1450 = vmul.f32 %v1308, %v1429
    %v1451 = vmul.f32 %v1315, %v1429
    %v1452 = vmul.f32 %v1322, %v1429
    %v1453 = vmul.f32 %v1329, %v1429
    %v1454 = vmul.f32 %v1336, %v1429
    %v1455 = vmul.f32 %v1343, %v1429
    %v1456 = vmul.f32 %v1350, %v1429
    %v1457 = vmul.f32 %v1357, %v1429
    %v1458 = vmul.f32 %v1364, %v1429
    %v1459 = vmul.f32 %v1371, %v1429
    %v1460 = vmul.f32 %v1378, %v1429
    %v1461 = vmul.f32 %v1385, %v1429
    %vm1462 = vcmp.ge.f32.partialorder %v1430, 0.3
    %vm1463 = vcmp.ge.f32.partialorder %v1431, 0.3
    %vm1464 = vcmp.ge.f32.partialorder %v1432, 0.3
    %vm1465 = vcmp.ge.f32.partialorder %v1433, 0.3
    %vm1466 = vcmp.ge.f32.partialorder %v1434, 0.3
    %vm1467 = vcmp.ge.f32.partialorder %v1435, 0.3
    %vm1468 = vcmp.ge.f32.partialorder %v1436, 0.3
    %vm1469 = vcmp.ge.f32.partialorder %v1437, 0.3
    %vm1470 = vcmp.ge.f32.partialorder %v1438, 0.3
    %vm1471 = vcmp.ge.f32.partialorder %v1439, 0.3
    %vm1472 = vcmp.ge.f32.partialorder %v1440, 0.3
    %vm1473 = vcmp.ge.f32.partialorder %v1441, 0.3
    %vm1474 = vcmp.ge.f32.partialorder %v1442, 0.3
    %vm1475 = vcmp.ge.f32.partialorder %v1443, 0.3
    %vm1476 = vcmp.ge.f32.partialorder %v1444, 0.3
    %vm1477 = vcmp.ge.f32.partialorder %v1445, 0.3
    %vm1478 = vcmp.ge.f32.partialorder %v1446, 0.3
    %vm1479 = vcmp.ge.f32.partialorder %v1447, 0.3
    %vm1480 = vcmp.ge.f32.partialorder %v1448, 0.3
    %vm1481 = vcmp.ge.f32.partialorder %v1449, 0.3
    %vm1482 = vcmp.ge.f32.partialorder %v1450, 0.3
    %vm1483 = vcmp.ge.f32.partialorder %v1451, 0.3
    %vm1484 = vcmp.ge.f32.partialorder %v1452, 0.3
    %vm1485 = vcmp.ge.f32.partialorder %v1453, 0.3
    %vm1486 = vcmp.ge.f32.partialorder %v1454, 0.3
    %vm1487 = vcmp.ge.f32.partialorder %v1455, 0.3
    %vm1488 = vcmp.ge.f32.partialorder %v1456, 0.3
    %vm1489 = vcmp.ge.f32.partialorder %v1457, 0.3
    %vm1490 = vcmp.ge.f32.partialorder %v1458, 0.3
    %vm1491 = vcmp.ge.f32.partialorder %v1459, 0.3
    %vm1492 = vcmp.ge.f32.partialorder %v1460, 0.3
    %vm1493 = vcmp.ge.f32.partialorder %v1461, 0.3
    %v1494 = vsel %vm1462, 1.0, %v1430
    %v1495 = vsel %vm1463, 1.0, %v1431
    %v1496 = vsel %vm1464, 1.0, %v1432
    %v1497 = vsel %vm1465, 1.0, %v1433
    %v1498 = vsel %vm1466, 1.0, %v1434
    %v1499 = vsel %vm1467, 1.0, %v1435
    %v1500 = vsel %vm1468, 1.0, %v1436
    %v1501 = vsel %vm1469, 1.0, %v1437
    %v1502 = vsel %vm1470, 1.0, %v1438
    %v1503 = vsel %vm1471, 1.0, %v1439
    %v1504 = vsel %vm1472, 1.0, %v1440
    %v1505 = vsel %vm1473, 1.0, %v1441
    %v1506 = vsel %vm1474, 1.0, %v1442
    %v1507 = vsel %vm1475, 1.0, %v1443
    %v1508 = vsel %vm1476, 1.0, %v1444
    %v1509 = vsel %vm1477, 1.0, %v1445
    %v1510 = vsel %vm1478, 1.0, %v1446
    %v1511 = vsel %vm1479, 1.0, %v1447
    %v1512 = vsel %vm1480, 1.0, %v1448
    %v1513 = vsel %vm1481, 1.0, %v1449
    %v1514 = vsel %vm1482, 1.0, %v1450
    %v1515 = vsel %vm1483, 1.0, %v1451
    %v1516 = vsel %vm1484, 1.0, %v1452
    %v1517 = vsel %vm1485, 1.0, %v1453
    %v1518 = vsel %vm1486, 1.0, %v1454
    %v1519 = vsel %vm1487, 1.0, %v1455
    %v1520 = vsel %vm1488, 1.0, %v1456
    %v1521 = vsel %vm1489, 1.0, %v1457
    %v1522 = vsel %vm1490, 1.0, %v1458
    %v1523 = vsel %vm1491, 1.0, %v1459
    %v1524 = vsel %vm1492, 1.0, %v1460
    %v1525 = vsel %vm1493, 1.0, %v1461
    %vm1526 = vcmp.le.f32.partialorder %v1494, 0.1
    %vm1527 = vcmp.le.f32.partialorder %v1495, 0.1
    %vm1528 = vcmp.le.f32.partialorder %v1496, 0.1
    %vm1529 = vcmp.le.f32.partialorder %v1497, 0.1
    %vm1530 = vcmp.le.f32.partialorder %v1498, 0.1
    %vm1531 = vcmp.le.f32.partialorder %v1499, 0.1
    %vm1532 = vcmp.le.f32.partialorder %v1500, 0.1
    %vm1533 = vcmp.le.f32.partialorder %v1501, 0.1
    %vm1534 = vcmp.le.f32.partialorder %v1502, 0.1
    %vm1535 = vcmp.le.f32.partialorder %v1503, 0.1
    %vm1536 = vcmp.le.f32.partialorder %v1504, 0.1
    %vm1537 = vcmp.le.f32.partialorder %v1505, 0.1
    %vm1538 = vcmp.le.f32.partialorder %v1506, 0.1
    %vm1539 = vcmp.le.f32.partialorder %v1507, 0.1
    %vm1540 = vcmp.le.f32.partialorder %v1508, 0.1
    %vm1541 = vcmp.le.f32.partialorder %v1509, 0.1
    %vm1542 = vcmp.le.f32.partialorder %v1510, 0.1
    %vm1543 = vcmp.le.f32.partialorder %v1511, 0.1
    %vm1544 = vcmp.le.f32.partialorder %v1512, 0.1
    %vm1545 = vcmp.le.f32.partialorder %v1513, 0.1
    %vm1546 = vcmp.le.f32.partialorder %v1514, 0.1
    %vm1547 = vcmp.le.f32.partialorder %v1515, 0.1
    %vm1548 = vcmp.le.f32.partialorder %v1516, 0.1
    %vm1549 = vcmp.le.f32.partialorder %v1517, 0.1
    %vm1550 = vcmp.le.f32.partialorder %v1518, 0.1
    %vm1551 = vcmp.le.f32.partialorder %v1519, 0.1
    %vm1552 = vcmp.le.f32.partialorder %v1520, 0.1
    %vm1553 = vcmp.le.f32.partialorder %v1521, 0.1
    %vm1554 = vcmp.le.f32.partialorder %v1522, 0.1
    %vm1555 = vcmp.le.f32.partialorder %v1523, 0.1
    %vm1556 = vcmp.le.f32.partialorder %v1524, 0.1
    %vm1557 = vcmp.le.f32.partialorder %v1525, 0.1
    %v1558 = vsel %vm1526, 0.0, %v1494
    %v1559 = vsel %vm1527, 0.0, %v1495
    %v1560 = vsel %vm1528, 0.0, %v1496
    %v1561 = vsel %vm1529, 0.0, %v1497
    %v1562 = vsel %vm1530, 0.0, %v1498
    %v1563 = vsel %vm1531, 0.0, %v1499
    %v1564 = vsel %vm1532, 0.0, %v1500
    %v1565 = vsel %vm1533, 0.0, %v1501
    %v1566 = vsel %vm1534, 0.0, %v1502
    %v1567 = vsel %vm1535, 0.0, %v1503
    %v1568 = vsel %vm1536, 0.0, %v1504
    %v1569 = vsel %vm1537, 0.0, %v1505
    %v1570 = vsel %vm1538, 0.0, %v1506
    %v1571 = vsel %vm1539, 0.0, %v1507
    %v1572 = vsel %vm1540, 0.0, %v1508
    %v1573 = vsel %vm1541, 0.0, %v1509
    %v1574 = vsel %vm1542, 0.0, %v1510
    %v1575 = vsel %vm1543, 0.0, %v1511
    %v1576 = vsel %vm1544, 0.0, %v1512
    %v1577 = vsel %vm1545, 0.0, %v1513
    %v1578 = vsel %vm1546, 0.0, %v1514
    %v1579 = vsel %vm1547, 0.0, %v1515
    %v1580 = vsel %vm1548, 0.0, %v1516
    %v1581 = vsel %vm1549, 0.0, %v1517
    %v1582 = vsel %vm1550, 0.0, %v1518
    %v1583 = vsel %vm1551, 0.0, %v1519
    %v1584 = vsel %vm1552, 0.0, %v1520
    %v1585 = vsel %vm1553, 0.0, %v1521
    %v1586 = vsel %vm1554, 0.0, %v1522
    %v1587 = vsel %vm1555, 0.0, %v1523
    %v1588 = vsel %vm1556, 0.0, %v1524
    %v1589 = vsel %vm1557, 0.0, %v1525
    %1590 = vst [vmem:[#allocation5] sm:$0xff] %v1558
    %1591 = vst [vmem:[#allocation5 + $0x8] sm:$0xff] %v1559
    %1592 = vst [vmem:[#allocation5 + $0x10] sm:$0xff] %v1560
    %1593 = vst [vmem:[#allocation5 + $0x18] sm:$0xff] %v1561
    %1594 = vst [vmem:[#allocation5 + $0x20] sm:$0xff] %v1562
    %1595 = vst [vmem:[#allocation5 + $0x28] sm:$0xff] %v1563
    %1596 = vst [vmem:[#allocation5 + $0x30] sm:$0xff] %v1564
    %1597 = vst [vmem:[#allocation5 + $0x38] sm:$0xff] %v1565
    %1598 = vst [vmem:[#allocation5 + $0x40] sm:$0xff] %v1566
    %1599 = vst [vmem:[#allocation5 + $0x48] sm:$0xff] %v1567
    %1600 = vst [vmem:[#allocation5 + $0x50] sm:$0xff] %v1568
    %1601 = vst [vmem:[#allocation5 + $0x58] sm:$0xff] %v1569
    %1602 = vst [vmem:[#allocation5 + $0x60] sm:$0xff] %v1570
    %1603 = vst [vmem:[#allocation5 + $0x68] sm:$0xff] %v1571
    %1604 = vst [vmem:[#allocation5 + $0x70] sm:$0xff] %v1572
    %1605 = vst [vmem:[#allocation5 + $0x78] sm:$0xff] %v1573
    %1606 = vst [vmem:[#allocation5 + $0x80] sm:$0xff] %v1574
    %1607 = vst [vmem:[#allocation5 + $0x88] sm:$0xff] %v1575
    %1608 = vst [vmem:[#allocation5 + $0x90] sm:$0xff] %v1576
    %1609 = vst [vmem:[#allocation5 + $0x98] sm:$0xff] %v1577
    %1610 = vst [vmem:[#allocation5 + $0xa0] sm:$0xff] %v1578
    %1611 = vst [vmem:[#allocation5 + $0xa8] sm:$0xff] %v1579
    %1612 = vst [vmem:[#allocation5 + $0xb0] sm:$0xff] %v1580
    %1613 = vst [vmem:[#allocation5 + $0xb8] sm:$0xff] %v1581
    %1614 = vst [vmem:[#allocation5 + $0xc0] sm:$0xff] %v1582
    %1615 = vst [vmem:[#allocation5 + $0xc8] sm:$0xff] %v1583
    %1616 = vst [vmem:[#allocation5 + $0xd0] sm:$0xff] %v1584
    %1617 = vst [vmem:[#allocation5 + $0xd8] sm:$0xff] %v1585
    %1618 = vst [vmem:[#allocation5 + $0xe0] sm:$0xff] %v1586
    %1619 = vst [vmem:[#allocation5 + $0xe8] sm:$0xff] %v1587
    %1620 = vst [vmem:[#allocation5 + $0xf0] sm:$0xff] %v1588
    %1621 = vst [vmem:[#allocation5 + $0xf8] sm:$0xff] %v1589
    // Predicated region
    $region10: #{sobel_operator.1} parent=1 // pred_check
      _
    $region11: #{sobel_operator.1} parent=1 // pred_check_branch
      %1623 = sbr.rel (0) target = $region13
    $region12: #{sobel_operator.1} parent=1 // pred_region
      %s1625 = ssub.s32 4096, 4096
      %1626 = vsyncadd [#allocation4], %s1625
      %s1627 = sshll.u32 [#allocation5], 4
      %s1628 = int_to_ptr.vmem [resolvable:$true] %s1627
      %1633 = dma.vmem_to_hbm [thread:$0]  %s1628, 4096, %s1, [#allocation4], 256, 256, 16
    $region13: #{sobel_operator.1} parent=1 // pred_fallthru
      _
    // Predicated region
    $region14: #{sobel_operator.1} parent=1 // pred_check
      _
    $region15: #{sobel_operator.1} parent=1 // pred_check_branch
      %1635 = sbr.rel (0) target = $region17
    $region16: #{sobel_operator.1} parent=1 // pred_region
      %1636 = dma.done [#allocation4], 4096
    $region17: #{sobel_operator.1} parent=1 // pred_fallthru
      _
    %1637 = vsyncpa [#allocation3], 1
    %1638 = vsyncpa [#allocation4], 1

</llo_original>
